<compile_context>
chip_gen: v7x
topology: tpu7x:2x2x1
jax: 0.10.0
libtpu: 0.0.40
codegen_flags: <defaults>
</compile_context>

<pallas_src>
import functools

import jax
import jax.numpy as jnp
from jax.experimental import pallas as pl
from jax.experimental.pallas import tpu as pltpu


# ----------------------------------------------------------------------------
# Backend-dependent dtypes.
#  * _MM_DTYPE: dtype of matmul inputs. bf16 on TPU (MXU-native); f32 elsewhere
#    (interpret/CPU execution does not support bf16 x bf16 = f32 dots).
#  * _ACT_DTYPE: storage dtype of inter-layer activations in HBM (bf16 halves
#    the dominant memory traffic; exact-enough since the next layer's matmul
#    inputs are (at most) bf16 anyway).
# ----------------------------------------------------------------------------
_ON_TPU = jax.default_backend() == "tpu"
_MM_DTYPE = jnp.bfloat16 if _ON_TPU else jnp.float32
_ACT_DTYPE = jnp.bfloat16


# ----------------------------------------------------------------------------
# Helpers
# ----------------------------------------------------------------------------
def _round_up(n, m):
    return ((n + m - 1) // m) * m


# ----------------------------------------------------------------------------
# Pallas kernel: one RNN layer, time-chunked recurrence.
#   * input projection for the whole chunk = one MXU GEMM, staged in VMEM
#   * recurrence loop fully unrolled (tc is small/static), h in f32 scratch
#   * optional fused Linear head on the last layer / last chunk
# ----------------------------------------------------------------------------
def _make_rnn_kernel(*, fuse_fc, valid_in_last_chunk):
    """valid_in_last_chunk: number of real (non-padded) timesteps in the last
    time chunk; steps t >= valid_in_last_chunk are masked when c == last."""

    def kernel(*refs):
        i = 0
        x_ref = refs[i]; i += 1          # (Tc, Bp, K)  time-major, _ACT_DTYPE
        wih_ref = refs[i]; i += 1        # (K, Hp)      _MM_DTYPE
        b_ref = refs[i]; i += 1          # (1, Hp)      f32  (b_ih + b_hh)
        whh_ref = refs[i]; i += 1        # (Hp, Hp)     _MM_DTYPE
        wfc_ref = bfc_ref = None
        if fuse_fc:
            wfc_ref = refs[i]; i += 1    # (Hp, Cp)     _MM_DTYPE
            bfc_ref = refs[i]; i += 1    # (1, Cp)      f32
        out_ref = refs[i]; i += 1        # (Tc,Bp,Hp) act  or  (Bp,Cp) f32
        h_scr = refs[i]; i += 1          # (Bp, Hp)     f32 hidden state
        pre_scr = refs[i]                # (Tc*Bp, Hp)  f32 projection buffer

        c = pl.program_id(0)
        n_chunks = pl.num_programs(0)

        @pl.when(c == 0)
        def _():
            h_scr[...] = jnp.zeros_like(h_scr)       # h0 = zeros

        tc, bt, k = x_ref.shape
        hp = whh_ref.shape[0]
        mm = wih_ref.dtype

        # Whole-chunk input projection as one big GEMM (M = Tc*Bp rows),
        # parked in VMEM scratch so it never pins vregs across the loop.
        x2 = x_ref[...].reshape(tc * bt, k).astype(mm)
        pre_scr[...] = (
            jnp.dot(x2, wih_ref[...], preferred_element_type=jnp.float32)
            + b_ref[...]
        )

        h = h_scr[...]                                # (Bp, Hp) f32
        for t in range(tc):                           # short, static, unrolled
            pre_t = pre_scr[pl.ds(t * bt, bt), :]     # (Bp, Hp) from VMEM
            z = pre_t + jnp.dot(h.astype(mm), whh_ref[...],
                                preferred_element_type=jnp.float32)
            h_new = jnp.tanh(z)
            if t >= valid_in_last_chunk:
                # This step is a time-padding step in the last chunk: keep h.
                h_new = jnp.where(c < n_chunks - 1, h_new, h)
            h = h_new
            if not fuse_fc:
                out_ref[t] = h.astype(out_ref.dtype)  # bf16 seq output
        h_scr[...] = h

        if fuse_fc:
            # Fused Linear head: single lane-dense (Bp, Cp) write on the last
            # chunk (output block index is constant over the time axis).
            @pl.when(c == n_chunks - 1)
            def _():
                logits = (jnp.dot(h.astype(mm), wfc_ref[...],
                                  preferred_element_type=jnp.float32)
                          + bfc_ref[...])
                out_ref[...] = logits.astype(out_ref.dtype)

    return kernel


def _rnn_layer_call(x_tm, wih, whh, b, wfc=None, bfc=None, *, fuse_fc, tc, T):
    """Run one RNN layer.

    x_tm: (Tp, Bp, K) time-major, already padded (Tp = n_chunks * tc).
    Returns (Tp, Bp, Hp) bf16 sequence, or (Bp, Cp) f32 logits if fuse_fc.
    """
    Tp, Bp, K = x_tm.shape
    Hp = whh.shape[0]
    n_chunks = Tp // tc
    valid_last = T - (n_chunks - 1) * tc          # real steps in last chunk

    kernel = _make_rnn_kernel(fuse_fc=fuse_fc, valid_in_last_chunk=valid_last)

    # NOTE: weight/bias specs have constant index maps so they are DMA'd once;
    # pipeline_mode=pl.Buffered(1) would also halve their VMEM residency but
    # is left at the default for portability across jax versions.
    in_specs = [
        pl.BlockSpec((tc, Bp, K), lambda c: (c, 0, 0)),
        pl.BlockSpec((K, Hp), lambda c: (0, 0)),
        pl.BlockSpec((1, Hp), lambda c: (0, 0)),
        pl.BlockSpec((Hp, Hp), lambda c: (0, 0)),
    ]
    inputs = [x_tm, wih, b, whh]
    if fuse_fc:
        Cp = wfc.shape[1]
        in_specs += [pl.BlockSpec((Hp, Cp), lambda c: (0, 0)),
                     pl.BlockSpec((1, Cp), lambda c: (0, 0))]
        inputs += [wfc, bfc]
        out_shape = jax.ShapeDtypeStruct((Bp, Cp), jnp.float32)
        out_spec = pl.BlockSpec((Bp, Cp), lambda c: (0, 0))
    else:
        out_shape = jax.ShapeDtypeStruct((Tp, Bp, Hp), _ACT_DTYPE)
        out_spec = pl.BlockSpec((tc, Bp, Hp), lambda c: (c, 0, 0))

    # VMEM budget from the actual block sizes (+ headroom), clamped so it is
    # neither too small for big H/Tc nor above a v7x-safe (64 MiB/TC) ceiling.
    mm_b = jnp.dtype(_MM_DTYPE).itemsize
    act_b = jnp.dtype(_ACT_DTYPE).itemsize
    need = 2 * tc * Bp * K * act_b                          # x chunk (x2 bufs)
    need += 2 * ((K + Hp) * Hp * mm_b + Hp * 4)             # wih + whh + bias
    if fuse_fc:
        Cp = wfc.shape[1]
        need += 2 * (Hp * Cp * mm_b + Cp * 4)               # fc weight + bias
        need += 2 * Bp * Cp * 4                             # logits block
    else:
        need += 2 * tc * Bp * Hp * act_b                    # seq output chunk
    need += Bp * Hp * 4 + tc * Bp * Hp * 4                  # h_scr + pre_scr
    vmem_limit = int(min(max(need * 5 // 4 + (8 << 20), 32 << 20), 56 << 20))

    return pl.pallas_call(
        kernel,
        out_shape=out_shape,
        grid_spec=pltpu.PrefetchScalarGridSpec(
            num_scalar_prefetch=0,
            grid=(n_chunks,),                   # strictly sequential recurrence
            in_specs=in_specs,
            out_specs=out_spec,
            scratch_shapes=[
                pltpu.VMEM((Bp, Hp), jnp.float32),        # hidden state
                pltpu.VMEM((tc * Bp, Hp), jnp.float32),   # chunk projection
            ],
        ),
        compiler_params=pltpu.CompilerParams(
            dimension_semantics=("arbitrary",),
            vmem_limit_bytes=vmem_limit,
        ),
    )(*inputs)


# ----------------------------------------------------------------------------
# Parameter handling
# ----------------------------------------------------------------------------
def init_params(key, input_size, hidden_size, num_layers, num_classes):
    """Raw PyTorch-layout parameters, U(-1/sqrt(H), 1/sqrt(H))."""
    params = {}
    k = 1.0 / jnp.sqrt(jnp.float32(hidden_size))
    for layer in range(num_layers):
        d_in = input_size if layer == 0 else hidden_size
        key, k1, k2, k3, k4 = jax.random.split(key, 5)
        w_ih = jax.random.uniform(k1, (hidden_size, d_in), jnp.float32, -k, k)
        w_hh = jax.random.uniform(k2, (hidden_size, hidden_size), jnp.float32, -k, k)
        b_ih = jax.random.uniform(k3, (hidden_size,), jnp.float32, -k, k)
        b_hh = jax.random.uniform(k4, (hidden_size,), jnp.float32, -k, k)
        params[f"rnn_l{layer}"] = (w_ih, w_hh, b_ih, b_hh)
    key, k1, k2 = jax.random.split(key, 3)
    w_fc = jax.random.uniform(k1, (num_classes, hidden_size), jnp.float32, -k, k)
    b_fc = jax.random.uniform(k2, (num_classes,), jnp.float32, -k, k)
    params["fc"] = (w_fc, b_fc)
    return params


def prepare_params(raw, num_layers):
    """Transpose, zero-pad to lane/sublane-dense shapes, cast to _MM_DTYPE.

    Zero padding keeps the math exact: padded hidden lanes stay exactly 0
    through tanh(0), padded batch rows never mix with real rows.
    """
    prepared = {}
    for layer in range(num_layers):
        w_ih, w_hh, b_ih, b_hh = raw[f"rnn_l{layer}"]
        H, Din = w_ih.shape
        Hp, Dp = _round_up(H, 128), _round_up(Din, 128)
        wih_t = jnp.zeros((Dp, Hp), _MM_DTYPE).at[:Din, :H].set(w_ih.T.astype(_MM_DTYPE))
        whh_t = jnp.zeros((Hp, Hp), _MM_DTYPE).at[:H, :H].set(w_hh.T.astype(_MM_DTYPE))
        bias = jnp.zeros((1, Hp), jnp.float32).at[0, :H].set(b_ih + b_hh)
        prepared[f"rnn_l{layer}"] = (wih_t, whh_t, bias)
    w_fc, b_fc = raw["fc"]
    C, H = w_fc.shape
    Hp, Cp = _round_up(H, 128), _round_up(C, 128)
    wfc_t = jnp.zeros((Hp, Cp), _MM_DTYPE).at[:H, :C].set(w_fc.T.astype(_MM_DTYPE))
    bfc = jnp.zeros((1, Cp), jnp.float32).at[0, :C].set(b_fc)
    prepared["fc"] = (wfc_t, bfc)
    return prepared


# ----------------------------------------------------------------------------
# Forward pass (== RNNModel.forward: multi-layer tanh RNN, h0 = 0, FC on the
# hidden state of the last timestep)
# ----------------------------------------------------------------------------
@functools.partial(jax.jit, static_argnames=("num_layers", "num_classes"))
def rnn_model_forward(x, params, num_layers, num_classes):
    """x: (B, T, input_size) -> logits (B, num_classes)."""
    B, T, D = x.shape
    wih0, whh0, _ = params["rnn_l0"]
    Dp, Hp = wih0.shape
    Bp = _round_up(B, 8)

    # Time chunking: larger chunks amortize grid overhead and fill the MXU.
    # Awkward T is handled by padding time and masking inside the kernel.
    tc = min(T, 64)
    n_chunks = pl.cdiv(T, tc)
    Tp = n_chunks * tc

    # Pad (batch, time, feature), go time-major, store activations in bf16.
    x_p = jnp.pad(x, ((0, Bp - B), (0, Tp - T), (0, Dp - D)))
    seq = jnp.transpose(x_p, (1, 0, 2)).astype(_ACT_DTYPE)   # (Tp, Bp, Dp)

    wfc, bfc = params["fc"]
    out = None
    for layer in range(num_layers):
        wih, whh, b = params[f"rnn_l{layer}"]
        if layer == num_layers - 1:
            out = _rnn_layer_call(seq, wih, whh, b, wfc, bfc,
                                  fuse_fc=True, tc=tc, T=T)
        else:
            seq = _rnn_layer_call(seq, wih, whh, b,
                                  fuse_fc=False, tc=tc, T=T)
    return out[:B, :num_classes]


# ----------------------------------------------------------------------------
# Pure-JAX reference mirroring the kernel numerics (_MM_DTYPE matmul inputs,
# f32 accumulation, bf16 inter-layer storage) for the sanity check.
# ----------------------------------------------------------------------------
def _ref_forward(x, raw, num_layers):
    mm = _MM_DTYPE
    B, T, _ = x.shape
    seq = x.astype(_ACT_DTYPE)
    h = None
    for layer in range(num_layers):
        w_ih, w_hh, b_ih, b_hh = raw[f"rnn_l{layer}"]
        H = w_hh.shape[0]
        h = jnp.zeros((B, H), jnp.float32)
        ys = []
        for t in range(T):
            pre = (jnp.dot(seq[:, t, :].astype(mm), w_ih.T.astype(mm),
                           preferred_element_type=jnp.float32)
                   + jnp.dot(h.astype(mm), w_hh.T.astype(mm),
                             preferred_element_type=jnp.float32)
                   + b_ih + b_hh)
            h = jnp.tanh(pre)
            ys.append(h)
        seq = jnp.stack(ys, axis=1).astype(_ACT_DTYPE)
    w_fc, b_fc = raw["fc"]
    return jnp.dot(h.astype(mm), w_fc.T.astype(mm),
                   preferred_element_type=jnp.float32) + b_fc


if __name__ == "__main__":
    batch, seq_len = 2, 8
    input_size, hidden_size, num_layers, num_classes = 16, 32, 2, 10

    key = jax.random.PRNGKey(0)
    key, xk = jax.random.split(key)
    x = jax.random.normal(xk, (batch, seq_len, input_size), jnp.float32)

    raw_params = init_params(key, input_size, hidden_size, num_layers, num_classes)
    params = prepare_params(raw_params, num_layers)

    out = rnn_model_forward(x, params, num_layers, num_classes)
    out = jax.block_until_ready(out)

    ref = _ref_forward(x, raw_params, num_layers)
    assert out.shape == (batch, num_classes)
    assert jnp.allclose(out, ref, atol=2e-2, rtol=2e-2), "mismatch vs reference"

    print("KERNEL_OK")
</pallas_src>

<mosaic_0001>
module attributes {stable_mosaic.version = 11 : i64} {
  func.func @kernel(%arg0: i32, %arg1: memref<8x8x128xbf16, #tpu.memory_space<vmem>>, %arg2: memref<128x128xf32, #tpu.memory_space<vmem>>, %arg3: memref<1x128xf32, #tpu.memory_space<vmem>>, %arg4: memref<128x128xf32, #tpu.memory_space<vmem>>, %arg5: memref<128x128xf32, #tpu.memory_space<vmem>>, %arg6: memref<1x128xf32, #tpu.memory_space<vmem>>, %arg7: memref<8x128xf32, #tpu.memory_space<vmem>>, %arg8: memref<8x128xf32, #tpu.memory_space<vmem>>, %arg9: memref<64x128xf32, #tpu.memory_space<vmem>>) attributes {dimension_semantics = [#tpu.dimension_semantics<arbitrary>], iteration_bounds = array<i64: 1>, scalar_prefetch = 0 : i64, scratch_operands = 2 : i64, tpu.core_type = #tpu.core_type<tc>, window_params = [{transform_indices = @transform_0, window_bounds = array<i64: 8, 8, 128>}, {pipeline_mode = #tpu.pipeline_mode<synchronous>, transform_indices = @transform_1, window_bounds = array<i64: 128, 128>}, {pipeline_mode = #tpu.pipeline_mode<synchronous>, transform_indices = @transform_2, window_bounds = array<i64: 1, 128>}, {pipeline_mode = #tpu.pipeline_mode<synchronous>, transform_indices = @transform_3, window_bounds = array<i64: 128, 128>}, {pipeline_mode = #tpu.pipeline_mode<synchronous>, transform_indices = @transform_4, window_bounds = array<i64: 128, 128>}, {pipeline_mode = #tpu.pipeline_mode<synchronous>, transform_indices = @transform_5, window_bounds = array<i64: 1, 128>}, {pipeline_mode = #tpu.pipeline_mode<synchronous>, transform_indices = @transform_6, window_bounds = array<i64: 8, 128>}]} {
    %c0_i32 = arith.constant 0 : i32
    %0 = arith.cmpi eq, %arg0, %c0_i32 : i32
    %1 = arith.extui %0 : i1 to i32
    %c0_i32_0 = arith.constant 0 : i32
    %2 = arith.cmpi ne, %1, %c0_i32_0 : i32
    scf.if %2 {
      %cst_48 = arith.constant 0.000000e+00 : f32
      %57 = vector.broadcast %cst_48 : f32 to vector<8x128xf32>
      %c0_49 = arith.constant 0 : index
      %c0_50 = arith.constant 0 : index
      %58 = vector.load %arg8[%c0_49, %c0_50] : memref<8x128xf32, #tpu.memory_space<vmem>>, vector<8x128xf32>
      tpu.vector_store %arg8[%c0_49, %c0_50], %57 {strides = array<i32>} : memref<8x128xf32, #tpu.memory_space<vmem>>, vector<8x128xf32>,
    } else {
    }
    %c0 = arith.constant 0 : index
    %c0_1 = arith.constant 0 : index
    %c0_2 = arith.constant 0 : index
    %3 = vector.load %arg1[%c0, %c0_1, %c0_2] : memref<8x8x128xbf16, #tpu.memory_space<vmem>>, vector<8x8x128xbf16>
    %4 = vector.shape_cast %3 : vector<8x8x128xbf16> to vector<64x128xbf16>
    %5 = arith.extf %4 : vector<64x128xbf16> to vector<64x128xf32>
    %c0_3 = arith.constant 0 : index
    %c0_4 = arith.constant 0 : index
    %6 = vector.load %arg2[%c0_3, %c0_4] : memref<128x128xf32, #tpu.memory_space<vmem>>, vector<128x128xf32>
    %cst = arith.constant dense<0.000000e+00> : vector<64x128xf32>
    %7 = tpu.matmul %5, %6, %cst {dimension_numbers = #tpu.dot_dimension_numbers<[1], [0], [0], [1], [0, 0, 1, 1], [], []>} : vector<64x128xf32>, vector<128x128xf32>, vector<64x128xf32> -> vector<64x128xf32>
    %c0_5 = arith.constant 0 : index
    %c0_6 = arith.constant 0 : index
    %8 = vector.load %arg3[%c0_5, %c0_6] : memref<1x128xf32, #tpu.memory_space<vmem>>, vector<1x128xf32>
    %9 = vector.broadcast %8 : vector<1x128xf32> to vector<64x128xf32>
    %10 = arith.addf %7, %9 : vector<64x128xf32>
    %c0_7 = arith.constant 0 : index
    %c0_8 = arith.constant 0 : index
    %11 = vector.load %arg9[%c0_7, %c0_8] : memref<64x128xf32, #tpu.memory_space<vmem>>, vector<64x128xf32>
    tpu.vector_store %arg9[%c0_7, %c0_8], %10 {strides = array<i32>} : memref<64x128xf32, #tpu.memory_space<vmem>>, vector<64x128xf32>,
    %c0_9 = arith.constant 0 : index
    %c0_10 = arith.constant 0 : index
    %12 = vector.load %arg8[%c0_9, %c0_10] : memref<8x128xf32, #tpu.memory_space<vmem>>, vector<8x128xf32>
    %c0_11 = arith.constant 0 : index
    %c0_12 = arith.constant 0 : index
    %13 = vector.load %arg9[%c0_11, %c0_12] : memref<64x128xf32, #tpu.memory_space<vmem>>, vector<8x128xf32>
    %c0_13 = arith.constant 0 : index
    %c0_14 = arith.constant 0 : index
    %14 = vector.load %arg4[%c0_13, %c0_14] : memref<128x128xf32, #tpu.memory_space<vmem>>, vector<128x128xf32>
    %cst_15 = arith.constant dense<0.000000e+00> : vector<8x128xf32>
    %15 = tpu.matmul %12, %14, %cst_15 {dimension_numbers = #tpu.dot_dimension_numbers<[1], [0], [0], [1], [0, 0, 1, 1], [], []>} : vector<8x128xf32>, vector<128x128xf32>, vector<8x128xf32> -> vector<8x128xf32>
    %16 = arith.addf %13, %15 : vector<8x128xf32>
    %17 = math.tanh %16 : vector<8x128xf32>
    %c8 = arith.constant 8 : index
    %c0_16 = arith.constant 0 : index
    %18 = vector.load %arg9[%c8, %c0_16] : memref<64x128xf32, #tpu.memory_space<vmem>>, vector<8x128xf32>
    %c0_17 = arith.constant 0 : index
    %c0_18 = arith.constant 0 : index
    %19 = vector.load %arg4[%c0_17, %c0_18] : memref<128x128xf32, #tpu.memory_space<vmem>>, vector<128x128xf32>
    %cst_19 = arith.constant dense<0.000000e+00> : vector<8x128xf32>
    %20 = tpu.matmul %17, %19, %cst_19 {dimension_numbers = #tpu.dot_dimension_numbers<[1], [0], [0], [1], [0, 0, 1, 1], [], []>} : vector<8x128xf32>, vector<128x128xf32>, vector<8x128xf32> -> vector<8x128xf32>
    %21 = arith.addf %18, %20 : vector<8x128xf32>
    %22 = math.tanh %21 : vector<8x128xf32>
    %c16 = arith.constant 16 : index
    %c0_20 = arith.constant 0 : index
    %23 = vector.load %arg9[%c16, %c0_20] : memref<64x128xf32, #tpu.memory_space<vmem>>, vector<8x128xf32>
    %c0_21 = arith.constant 0 : index
    %c0_22 = arith.constant 0 : index
    %24 = vector.load %arg4[%c0_21, %c0_22] : memref<128x128xf32, #tpu.memory_space<vmem>>, vector<128x128xf32>
    %cst_23 = arith.constant dense<0.000000e+00> : vector<8x128xf32>
    %25 = tpu.matmul %22, %24, %cst_23 {dimension_numbers = #tpu.dot_dimension_numbers<[1], [0], [0], [1], [0, 0, 1, 1], [], []>} : vector<8x128xf32>, vector<128x128xf32>, vector<8x128xf32> -> vector<8x128xf32>
    %26 = arith.addf %23, %25 : vector<8x128xf32>
    %27 = math.tanh %26 : vector<8x128xf32>
    %c24 = arith.constant 24 : index
    %c0_24 = arith.constant 0 : index
    %28 = vector.load %arg9[%c24, %c0_24] : memref<64x128xf32, #tpu.memory_space<vmem>>, vector<8x128xf32>
    %c0_25 = arith.constant 0 : index
    %c0_26 = arith.constant 0 : index
    %29 = vector.load %arg4[%c0_25, %c0_26] : memref<128x128xf32, #tpu.memory_space<vmem>>, vector<128x128xf32>
    %cst_27 = arith.constant dense<0.000000e+00> : vector<8x128xf32>
    %30 = tpu.matmul %27, %29, %cst_27 {dimension_numbers = #tpu.dot_dimension_numbers<[1], [0], [0], [1], [0, 0, 1, 1], [], []>} : vector<8x128xf32>, vector<128x128xf32>, vector<8x128xf32> -> vector<8x128xf32>
    %31 = arith.addf %28, %30 : vector<8x128xf32>
    %32 = math.tanh %31 : vector<8x128xf32>
    %c32 = arith.constant 32 : index
    %c0_28 = arith.constant 0 : index
    %33 = vector.load %arg9[%c32, %c0_28] : memref<64x128xf32, #tpu.memory_space<vmem>>, vector<8x128xf32>
    %c0_29 = arith.constant 0 : index
    %c0_30 = arith.constant 0 : index
    %34 = vector.load %arg4[%c0_29, %c0_30] : memref<128x128xf32, #tpu.memory_space<vmem>>, vector<128x128xf32>
    %cst_31 = arith.constant dense<0.000000e+00> : vector<8x128xf32>
    %35 = tpu.matmul %32, %34, %cst_31 {dimension_numbers = #tpu.dot_dimension_numbers<[1], [0], [0], [1], [0, 0, 1, 1], [], []>} : vector<8x128xf32>, vector<128x128xf32>, vector<8x128xf32> -> vector<8x128xf32>
    %36 = arith.addf %33, %35 : vector<8x128xf32>
    %37 = math.tanh %36 : vector<8x128xf32>
    %c40 = arith.constant 40 : index
    %c0_32 = arith.constant 0 : index
    %38 = vector.load %arg9[%c40, %c0_32] : memref<64x128xf32, #tpu.memory_space<vmem>>, vector<8x128xf32>
    %c0_33 = arith.constant 0 : index
    %c0_34 = arith.constant 0 : index
    %39 = vector.load %arg4[%c0_33, %c0_34] : memref<128x128xf32, #tpu.memory_space<vmem>>, vector<128x128xf32>
    %cst_35 = arith.constant dense<0.000000e+00> : vector<8x128xf32>
    %40 = tpu.matmul %37, %39, %cst_35 {dimension_numbers = #tpu.dot_dimension_numbers<[1], [0], [0], [1], [0, 0, 1, 1], [], []>} : vector<8x128xf32>, vector<128x128xf32>, vector<8x128xf32> -> vector<8x128xf32>
    %41 = arith.addf %38, %40 : vector<8x128xf32>
    %42 = math.tanh %41 : vector<8x128xf32>
    %c48 = arith.constant 48 : index
    %c0_36 = arith.constant 0 : index
    %43 = vector.load %arg9[%c48, %c0_36] : memref<64x128xf32, #tpu.memory_space<vmem>>, vector<8x128xf32>
    %c0_37 = arith.constant 0 : index
    %c0_38 = arith.constant 0 : index
    %44 = vector.load %arg4[%c0_37, %c0_38] : memref<128x128xf32, #tpu.memory_space<vmem>>, vector<128x128xf32>
    %cst_39 = arith.constant dense<0.000000e+00> : vector<8x128xf32>
    %45 = tpu.matmul %42, %44, %cst_39 {dimension_numbers = #tpu.dot_dimension_numbers<[1], [0], [0], [1], [0, 0, 1, 1], [], []>} : vector<8x128xf32>, vector<128x128xf32>, vector<8x128xf32> -> vector<8x128xf32>
    %46 = arith.addf %43, %45 : vector<8x128xf32>
    %47 = math.tanh %46 : vector<8x128xf32>
    %c56 = arith.constant 56 : index
    %c0_40 = arith.constant 0 : index
    %48 = vector.load %arg9[%c56, %c0_40] : memref<64x128xf32, #tpu.memory_space<vmem>>, vector<8x128xf32>
    %c0_41 = arith.constant 0 : index
    %c0_42 = arith.constant 0 : index
    %49 = vector.load %arg4[%c0_41, %c0_42] : memref<128x128xf32, #tpu.memory_space<vmem>>, vector<128x128xf32>
    %cst_43 = arith.constant dense<0.000000e+00> : vector<8x128xf32>
    %50 = tpu.matmul %47, %49, %cst_43 {dimension_numbers = #tpu.dot_dimension_numbers<[1], [0], [0], [1], [0, 0, 1, 1], [], []>} : vector<8x128xf32>, vector<128x128xf32>, vector<8x128xf32> -> vector<8x128xf32>
    %51 = arith.addf %48, %50 : vector<8x128xf32>
    %52 = math.tanh %51 : vector<8x128xf32>
    %c0_44 = arith.constant 0 : index
    %c0_45 = arith.constant 0 : index
    %53 = vector.load %arg8[%c0_44, %c0_45] : memref<8x128xf32, #tpu.memory_space<vmem>>, vector<8x128xf32>
    tpu.vector_store %arg8[%c0_44, %c0_45], %52 {strides = array<i32>} : memref<8x128xf32, #tpu.memory_space<vmem>>, vector<8x128xf32>,
    %c0_i32_46 = arith.constant 0 : i32
    %54 = arith.cmpi eq, %arg0, %c0_i32_46 : i32
    %55 = arith.extui %54 : i1 to i32
    %c0_i32_47 = arith.constant 0 : i32
    %56 = arith.cmpi ne, %55, %c0_i32_47 : i32
    scf.if %56 {
      %c0_48 = arith.constant 0 : index
      %c0_49 = arith.constant 0 : index
      %57 = vector.load %arg5[%c0_48, %c0_49] : memref<128x128xf32, #tpu.memory_space<vmem>>, vector<128x128xf32>
      %cst_50 = arith.constant dense<0.000000e+00> : vector<8x128xf32>
      %58 = tpu.matmul %52, %57, %cst_50 {dimension_numbers = #tpu.dot_dimension_numbers<[1], [0], [0], [1], [0, 0, 1, 1], [], []>} : vector<8x128xf32>, vector<128x128xf32>, vector<8x128xf32> -> vector<8x128xf32>
      %c0_51 = arith.constant 0 : index
      %c0_52 = arith.constant 0 : index
      %59 = vector.load %arg6[%c0_51, %c0_52] : memref<1x128xf32, #tpu.memory_space<vmem>>, vector<1x128xf32>
      %60 = vector.broadcast %59 : vector<1x128xf32> to vector<8x128xf32>
      %61 = arith.addf %58, %60 : vector<8x128xf32>
      %c0_53 = arith.constant 0 : index
      %c0_54 = arith.constant 0 : index
      %62 = vector.load %arg7[%c0_53, %c0_54] : memref<8x128xf32, #tpu.memory_space<vmem>>, vector<8x128xf32>
      tpu.vector_store %arg7[%c0_53, %c0_54], %61 {strides = array<i32>} : memref<8x128xf32, #tpu.memory_space<vmem>>, vector<8x128xf32>,
    } else {
    }
    return
  }
  func.func @transform_0(%arg0: i32) -> (i32, i32, i32) {
    %c0_i32 = arith.constant 0 : i32
    %c0_i32_0 = arith.constant 0 : i32
    %c0_i32_1 = arith.constant 0 : i32
    return %arg0, %c0_i32, %c0_i32_0 : i32, i32, i32
  }
  func.func @transform_1(%arg0: i32) -> (i32, i32) {
    %c0_i32 = arith.constant 0 : i32
    %c0_i32_0 = arith.constant 0 : i32
    %c0_i32_1 = arith.constant 0 : i32
    return %c0_i32, %c0_i32_0 : i32, i32
  }
  func.func @transform_2(%arg0: i32) -> (i32, i32) {
    %c0_i32 = arith.constant 0 : i32
    %c0_i32_0 = arith.constant 0 : i32
    %c0_i32_1 = arith.constant 0 : i32
    return %c0_i32, %c0_i32_0 : i32, i32
  }
  func.func @transform_3(%arg0: i32) -> (i32, i32) {
    %c0_i32 = arith.constant 0 : i32
    %c0_i32_0 = arith.constant 0 : i32
    %c0_i32_1 = arith.constant 0 : i32
    return %c0_i32, %c0_i32_0 : i32, i32
  }
  func.func @transform_4(%arg0: i32) -> (i32, i32) {
    %c0_i32 = arith.constant 0 : i32
    %c0_i32_0 = arith.constant 0 : i32
    %c0_i32_1 = arith.constant 0 : i32
    return %c0_i32, %c0_i32_0 : i32, i32
  }
  func.func @transform_5(%arg0: i32) -> (i32, i32) {
    %c0_i32 = arith.constant 0 : i32
    %c0_i32_0 = arith.constant 0 : i32
    %c0_i32_1 = arith.constant 0 : i32
    return %c0_i32, %c0_i32_0 : i32, i32
  }
  func.func @transform_6(%arg0: i32) -> (i32, i32) {
    %c0_i32 = arith.constant 0 : i32
    %c0_i32_0 = arith.constant 0 : i32
    %c0_i32_1 = arith.constant 0 : i32
    return %c0_i32, %c0_i32_0 : i32, i32
  }
}

module attributes {stable_mosaic.version = 11 : i64} {
  func.func @kernel(%arg0: i32, %arg1: memref<8x8x128xbf16, #tpu.memory_space<vmem>>, %arg2: memref<128x128xf32, #tpu.memory_space<vmem>>, %arg3: memref<1x128xf32, #tpu.memory_space<vmem>>, %arg4: memref<128x128xf32, #tpu.memory_space<vmem>>, %arg5: memref<8x8x128xbf16, #tpu.memory_space<vmem>>, %arg6: memref<8x128xf32, #tpu.memory_space<vmem>>, %arg7: memref<64x128xf32, #tpu.memory_space<vmem>>) attributes {dimension_semantics = [#tpu.dimension_semantics<arbitrary>], iteration_bounds = array<i64: 1>, scalar_prefetch = 0 : i64, scratch_operands = 2 : i64, tpu.core_type = #tpu.core_type<tc>, window_params = [{transform_indices = @transform_0, window_bounds = array<i64: 8, 8, 128>}, {pipeline_mode = #tpu.pipeline_mode<synchronous>, transform_indices = @transform_1, window_bounds = array<i64: 128, 128>}, {pipeline_mode = #tpu.pipeline_mode<synchronous>, transform_indices = @transform_2, window_bounds = array<i64: 1, 128>}, {pipeline_mode = #tpu.pipeline_mode<synchronous>, transform_indices = @transform_3, window_bounds = array<i64: 128, 128>}, {transform_indices = @transform_4, window_bounds = array<i64: 8, 8, 128>}]} {
    %c0_i32 = arith.constant 0 : i32
    %0 = arith.cmpi eq, %arg0, %c0_i32 : i32
    %1 = arith.extui %0 : i1 to i32
    %c0_i32_0 = arith.constant 0 : i32
    %2 = arith.cmpi ne, %1, %c0_i32_0 : i32
    scf.if %2 {
      %cst_63 = arith.constant 0.000000e+00 : f32
      %86 = vector.broadcast %cst_63 : f32 to vector<8x128xf32>
      %c0_64 = arith.constant 0 : index
      %c0_65 = arith.constant 0 : index
      %87 = vector.load %arg6[%c0_64, %c0_65] : memref<8x128xf32, #tpu.memory_space<vmem>>, vector<8x128xf32>
      tpu.vector_store %arg6[%c0_64, %c0_65], %86 {strides = array<i32>} : memref<8x128xf32, #tpu.memory_space<vmem>>, vector<8x128xf32>,
    } else {
    }
    %c0 = arith.constant 0 : index
    %c0_1 = arith.constant 0 : index
    %c0_2 = arith.constant 0 : index
    %3 = vector.load %arg1[%c0, %c0_1, %c0_2] : memref<8x8x128xbf16, #tpu.memory_space<vmem>>, vector<8x8x128xbf16>
    %4 = vector.shape_cast %3 : vector<8x8x128xbf16> to vector<64x128xbf16>
    %5 = arith.extf %4 : vector<64x128xbf16> to vector<64x128xf32>
    %c0_3 = arith.constant 0 : index
    %c0_4 = arith.constant 0 : index
    %6 = vector.load %arg2[%c0_3, %c0_4] : memref<128x128xf32, #tpu.memory_space<vmem>>, vector<128x128xf32>
    %cst = arith.constant dense<0.000000e+00> : vector<64x128xf32>
    %7 = tpu.matmul %5, %6, %cst {dimension_numbers = #tpu.dot_dimension_numbers<[1], [0], [0], [1], [0, 0, 1, 1], [], []>} : vector<64x128xf32>, vector<128x128xf32>, vector<64x128xf32> -> vector<64x128xf32>
    %c0_5 = arith.constant 0 : index
    %c0_6 = arith.constant 0 : index
    %8 = vector.load %arg3[%c0_5, %c0_6] : memref<1x128xf32, #tpu.memory_space<vmem>>, vector<1x128xf32>
    %9 = vector.broadcast %8 : vector<1x128xf32> to vector<64x128xf32>
    %10 = arith.addf %7, %9 : vector<64x128xf32>
    %c0_7 = arith.constant 0 : index
    %c0_8 = arith.constant 0 : index
    %11 = vector.load %arg7[%c0_7, %c0_8] : memref<64x128xf32, #tpu.memory_space<vmem>>, vector<64x128xf32>
    tpu.vector_store %arg7[%c0_7, %c0_8], %10 {strides = array<i32>} : memref<64x128xf32, #tpu.memory_space<vmem>>, vector<64x128xf32>,
    %c0_9 = arith.constant 0 : index
    %c0_10 = arith.constant 0 : index
    %12 = vector.load %arg6[%c0_9, %c0_10] : memref<8x128xf32, #tpu.memory_space<vmem>>, vector<8x128xf32>
    %c0_11 = arith.constant 0 : index
    %c0_12 = arith.constant 0 : index
    %13 = vector.load %arg7[%c0_11, %c0_12] : memref<64x128xf32, #tpu.memory_space<vmem>>, vector<8x128xf32>
    %c0_13 = arith.constant 0 : index
    %c0_14 = arith.constant 0 : index
    %14 = vector.load %arg4[%c0_13, %c0_14] : memref<128x128xf32, #tpu.memory_space<vmem>>, vector<128x128xf32>
    %cst_15 = arith.constant dense<0.000000e+00> : vector<8x128xf32>
    %15 = tpu.matmul %12, %14, %cst_15 {dimension_numbers = #tpu.dot_dimension_numbers<[1], [0], [0], [1], [0, 0, 1, 1], [], []>} : vector<8x128xf32>, vector<128x128xf32>, vector<8x128xf32> -> vector<8x128xf32>
    %16 = arith.addf %13, %15 : vector<8x128xf32>
    %17 = math.tanh %16 : vector<8x128xf32>
    %18 = arith.truncf %17 : vector<8x128xf32> to vector<8x128xbf16>
    %c0_16 = arith.constant 0 : index
    %c0_17 = arith.constant 0 : index
    %c0_18 = arith.constant 0 : index
    %19 = vector.load %arg5[%c0_16, %c0_17, %c0_18] : memref<8x8x128xbf16, #tpu.memory_space<vmem>>, vector<1x8x128xbf16>
    %20 = vector.shape_cast %19 : vector<1x8x128xbf16> to vector<8x128xbf16>
    %21 = vector.shape_cast %18 : vector<8x128xbf16> to vector<1x8x128xbf16>
    tpu.vector_store %arg5[%c0_16, %c0_17, %c0_18], %21 {strides = array<i32>} : memref<8x8x128xbf16, #tpu.memory_space<vmem>>, vector<1x8x128xbf16>,
    %c8 = arith.constant 8 : index
    %c0_19 = arith.constant 0 : index
    %22 = vector.load %arg7[%c8, %c0_19] : memref<64x128xf32, #tpu.memory_space<vmem>>, vector<8x128xf32>
    %c0_20 = arith.constant 0 : index
    %c0_21 = arith.constant 0 : index
    %23 = vector.load %arg4[%c0_20, %c0_21] : memref<128x128xf32, #tpu.memory_space<vmem>>, vector<128x128xf32>
    %cst_22 = arith.constant dense<0.000000e+00> : vector<8x128xf32>
    %24 = tpu.matmul %17, %23, %cst_22 {dimension_numbers = #tpu.dot_dimension_numbers<[1], [0], [0], [1], [0, 0, 1, 1], [], []>} : vector<8x128xf32>, vector<128x128xf32>, vector<8x128xf32> -> vector<8x128xf32>
    %25 = arith.addf %22, %24 : vector<8x128xf32>
    %26 = math.tanh %25 : vector<8x128xf32>
    %27 = arith.truncf %26 : vector<8x128xf32> to vector<8x128xbf16>
    %c1 = arith.constant 1 : index
    %c0_23 = arith.constant 0 : index
    %c0_24 = arith.constant 0 : index
    %28 = vector.load %arg5[%c1, %c0_23, %c0_24] : memref<8x8x128xbf16, #tpu.memory_space<vmem>>, vector<1x8x128xbf16>
    %29 = vector.shape_cast %28 : vector<1x8x128xbf16> to vector<8x128xbf16>
    %30 = vector.shape_cast %27 : vector<8x128xbf16> to vector<1x8x128xbf16>
    tpu.vector_store %arg5[%c1, %c0_23, %c0_24], %30 {strides = array<i32>} : memref<8x8x128xbf16, #tpu.memory_space<vmem>>, vector<1x8x128xbf16>,
    %c16 = arith.constant 16 : index
    %c0_25 = arith.constant 0 : index
    %31 = vector.load %arg7[%c16, %c0_25] : memref<64x128xf32, #tpu.memory_space<vmem>>, vector<8x128xf32>
    %c0_26 = arith.constant 0 : index
    %c0_27 = arith.constant 0 : index
    %32 = vector.load %arg4[%c0_26, %c0_27] : memref<128x128xf32, #tpu.memory_space<vmem>>, vector<128x128xf32>
    %cst_28 = arith.constant dense<0.000000e+00> : vector<8x128xf32>
    %33 = tpu.matmul %26, %32, %cst_28 {dimension_numbers = #tpu.dot_dimension_numbers<[1], [0], [0], [1], [0, 0, 1, 1], [], []>} : vector<8x128xf32>, vector<128x128xf32>, vector<8x128xf32> -> vector<8x128xf32>
    %34 = arith.addf %31, %33 : vector<8x128xf32>
    %35 = math.tanh %34 : vector<8x128xf32>
    %36 = arith.truncf %35 : vector<8x128xf32> to vector<8x128xbf16>
    %c2 = arith.constant 2 : index
    %c0_29 = arith.constant 0 : index
    %c0_30 = arith.constant 0 : index
    %37 = vector.load %arg5[%c2, %c0_29, %c0_30] : memref<8x8x128xbf16, #tpu.memory_space<vmem>>, vector<1x8x128xbf16>
    %38 = vector.shape_cast %37 : vector<1x8x128xbf16> to vector<8x128xbf16>
    %39 = vector.shape_cast %36 : vector<8x128xbf16> to vector<1x8x128xbf16>
    tpu.vector_store %arg5[%c2, %c0_29, %c0_30], %39 {strides = array<i32>} : memref<8x8x128xbf16, #tpu.memory_space<vmem>>, vector<1x8x128xbf16>,
    %c24 = arith.constant 24 : index
    %c0_31 = arith.constant 0 : index
    %40 = vector.load %arg7[%c24, %c0_31] : memref<64x128xf32, #tpu.memory_space<vmem>>, vector<8x128xf32>
    %c0_32 = arith.constant 0 : index
    %c0_33 = arith.constant 0 : index
    %41 = vector.load %arg4[%c0_32, %c0_33] : memref<128x128xf32, #tpu.memory_space<vmem>>, vector<128x128xf32>
    %cst_34 = arith.constant dense<0.000000e+00> : vector<8x128xf32>
    %42 = tpu.matmul %35, %41, %cst_34 {dimension_numbers = #tpu.dot_dimension_numbers<[1], [0], [0], [1], [0, 0, 1, 1], [], []>} : vector<8x128xf32>, vector<128x128xf32>, vector<8x128xf32> -> vector<8x128xf32>
    %43 = arith.addf %40, %42 : vector<8x128xf32>
    %44 = math.tanh %43 : vector<8x128xf32>
    %45 = arith.truncf %44 : vector<8x128xf32> to vector<8x128xbf16>
    %c3 = arith.constant 3 : index
    %c0_35 = arith.constant 0 : index
    %c0_36 = arith.constant 0 : index
    %46 = vector.load %arg5[%c3, %c0_35, %c0_36] : memref<8x8x128xbf16, #tpu.memory_space<vmem>>, vector<1x8x128xbf16>
    %47 = vector.shape_cast %46 : vector<1x8x128xbf16> to vector<8x128xbf16>
    %48 = vector.shape_cast %45 : vector<8x128xbf16> to vector<1x8x128xbf16>
    tpu.vector_store %arg5[%c3, %c0_35, %c0_36], %48 {strides = array<i32>} : memref<8x8x128xbf16, #tpu.memory_space<vmem>>, vector<1x8x128xbf16>,
    %c32 = arith.constant 32 : index
    %c0_37 = arith.constant 0 : index
    %49 = vector.load %arg7[%c32, %c0_37] : memref<64x128xf32, #tpu.memory_space<vmem>>, vector<8x128xf32>
    %c0_38 = arith.constant 0 : index
    %c0_39 = arith.constant 0 : index
    %50 = vector.load %arg4[%c0_38, %c0_39] : memref<128x128xf32, #tpu.memory_space<vmem>>, vector<128x128xf32>
    %cst_40 = arith.constant dense<0.000000e+00> : vector<8x128xf32>
    %51 = tpu.matmul %44, %50, %cst_40 {dimension_numbers = #tpu.dot_dimension_numbers<[1], [0], [0], [1], [0, 0, 1, 1], [], []>} : vector<8x128xf32>, vector<128x128xf32>, vector<8x128xf32> -> vector<8x128xf32>
    %52 = arith.addf %49, %51 : vector<8x128xf32>
    %53 = math.tanh %52 : vector<8x128xf32>
    %54 = arith.truncf %53 : vector<8x128xf32> to vector<8x128xbf16>
    %c4 = arith.constant 4 : index
    %c0_41 = arith.constant 0 : index
    %c0_42 = arith.constant 0 : index
    %55 = vector.load %arg5[%c4, %c0_41, %c0_42] : memref<8x8x128xbf16, #tpu.memory_space<vmem>>, vector<1x8x128xbf16>
    %56 = vector.shape_cast %55 : vector<1x8x128xbf16> to vector<8x128xbf16>
    %57 = vector.shape_cast %54 : vector<8x128xbf16> to vector<1x8x128xbf16>
    tpu.vector_store %arg5[%c4, %c0_41, %c0_42], %57 {strides = array<i32>} : memref<8x8x128xbf16, #tpu.memory_space<vmem>>, vector<1x8x128xbf16>,
    %c40 = arith.constant 40 : index
    %c0_43 = arith.constant 0 : index
    %58 = vector.load %arg7[%c40, %c0_43] : memref<64x128xf32, #tpu.memory_space<vmem>>, vector<8x128xf32>
    %c0_44 = arith.constant 0 : index
    %c0_45 = arith.constant 0 : index
    %59 = vector.load %arg4[%c0_44, %c0_45] : memref<128x128xf32, #tpu.memory_space<vmem>>, vector<128x128xf32>
    %cst_46 = arith.constant dense<0.000000e+00> : vector<8x128xf32>
    %60 = tpu.matmul %53, %59, %cst_46 {dimension_numbers = #tpu.dot_dimension_numbers<[1], [0], [0], [1], [0, 0, 1, 1], [], []>} : vector<8x128xf32>, vector<128x128xf32>, vector<8x128xf32> -> vector<8x128xf32>
    %61 = arith.addf %58, %60 : vector<8x128xf32>
    %62 = math.tanh %61 : vector<8x128xf32>
    %63 = arith.truncf %62 : vector<8x128xf32> to vector<8x128xbf16>
    %c5 = arith.constant 5 : index
    %c0_47 = arith.constant 0 : index
    %c0_48 = arith.constant 0 : index
    %64 = vector.load %arg5[%c5, %c0_47, %c0_48] : memref<8x8x128xbf16, #tpu.memory_space<vmem>>, vector<1x8x128xbf16>
    %65 = vector.shape_cast %64 : vector<1x8x128xbf16> to vector<8x128xbf16>
    %66 = vector.shape_cast %63 : vector<8x128xbf16> to vector<1x8x128xbf16>
    tpu.vector_store %arg5[%c5, %c0_47, %c0_48], %66 {strides = array<i32>} : memref<8x8x128xbf16, #tpu.memory_space<vmem>>, vector<1x8x128xbf16>,
    %c48 = arith.constant 48 : index
    %c0_49 = arith.constant 0 : index
    %67 = vector.load %arg7[%c48, %c0_49] : memref<64x128xf32, #tpu.memory_space<vmem>>, vector<8x128xf32>
    %c0_50 = arith.constant 0 : index
    %c0_51 = arith.constant 0 : index
    %68 = vector.load %arg4[%c0_50, %c0_51] : memref<128x128xf32, #tpu.memory_space<vmem>>, vector<128x128xf32>
    %cst_52 = arith.constant dense<0.000000e+00> : vector<8x128xf32>
    %69 = tpu.matmul %62, %68, %cst_52 {dimension_numbers = #tpu.dot_dimension_numbers<[1], [0], [0], [1], [0, 0, 1, 1], [], []>} : vector<8x128xf32>, vector<128x128xf32>, vector<8x128xf32> -> vector<8x128xf32>
    %70 = arith.addf %67, %69 : vector<8x128xf32>
    %71 = math.tanh %70 : vector<8x128xf32>
    %72 = arith.truncf %71 : vector<8x128xf32> to vector<8x128xbf16>
    %c6 = arith.constant 6 : index
    %c0_53 = arith.constant 0 : index
    %c0_54 = arith.constant 0 : index
    %73 = vector.load %arg5[%c6, %c0_53, %c0_54] : memref<8x8x128xbf16, #tpu.memory_space<vmem>>, vector<1x8x128xbf16>
    %74 = vector.shape_cast %73 : vector<1x8x128xbf16> to vector<8x128xbf16>
    %75 = vector.shape_cast %72 : vector<8x128xbf16> to vector<1x8x128xbf16>
    tpu.vector_store %arg5[%c6, %c0_53, %c0_54], %75 {strides = array<i32>} : memref<8x8x128xbf16, #tpu.memory_space<vmem>>, vector<1x8x128xbf16>,
    %c56 = arith.constant 56 : index
    %c0_55 = arith.constant 0 : index
    %76 = vector.load %arg7[%c56, %c0_55] : memref<64x128xf32, #tpu.memory_space<vmem>>, vector<8x128xf32>
    %c0_56 = arith.constant 0 : index
    %c0_57 = arith.constant 0 : index
    %77 = vector.load %arg4[%c0_56, %c0_57] : memref<128x128xf32, #tpu.memory_space<vmem>>, vector<128x128xf32>
    %cst_58 = arith.constant dense<0.000000e+00> : vector<8x128xf32>
    %78 = tpu.matmul %71, %77, %cst_58 {dimension_numbers = #tpu.dot_dimension_numbers<[1], [0], [0], [1], [0, 0, 1, 1], [], []>} : vector<8x128xf32>, vector<128x128xf32>, vector<8x128xf32> -> vector<8x128xf32>
    %79 = arith.addf %76, %78 : vector<8x128xf32>
    %80 = math.tanh %79 : vector<8x128xf32>
    %81 = arith.truncf %80 : vector<8x128xf32> to vector<8x128xbf16>
    %c7 = arith.constant 7 : index
    %c0_59 = arith.constant 0 : index
    %c0_60 = arith.constant 0 : index
    %82 = vector.load %arg5[%c7, %c0_59, %c0_60] : memref<8x8x128xbf16, #tpu.memory_space<vmem>>, vector<1x8x128xbf16>
    %83 = vector.shape_cast %82 : vector<1x8x128xbf16> to vector<8x128xbf16>
    %84 = vector.shape_cast %81 : vector<8x128xbf16> to vector<1x8x128xbf16>
    tpu.vector_store %arg5[%c7, %c0_59, %c0_60], %84 {strides = array<i32>} : memref<8x8x128xbf16, #tpu.memory_space<vmem>>, vector<1x8x128xbf16>,
    %c0_61 = arith.constant 0 : index
    %c0_62 = arith.constant 0 : index
    %85 = vector.load %arg6[%c0_61, %c0_62] : memref<8x128xf32, #tpu.memory_space<vmem>>, vector<8x128xf32>
    tpu.vector_store %arg6[%c0_61, %c0_62], %80 {strides = array<i32>} : memref<8x128xf32, #tpu.memory_space<vmem>>, vector<8x128xf32>,
    return
  }
  func.func @transform_0(%arg0: i32) -> (i32, i32, i32) {
    %c0_i32 = arith.constant 0 : i32
    %c0_i32_0 = arith.constant 0 : i32
    %c0_i32_1 = arith.constant 0 : i32
    return %arg0, %c0_i32, %c0_i32_0 : i32, i32, i32
  }
  func.func @transform_1(%arg0: i32) -> (i32, i32) {
    %c0_i32 = arith.constant 0 : i32
    %c0_i32_0 = arith.constant 0 : i32
    %c0_i32_1 = arith.constant 0 : i32
    return %c0_i32, %c0_i32_0 : i32, i32
  }
  func.func @transform_2(%arg0: i32) -> (i32, i32) {
    %c0_i32 = arith.constant 0 : i32
    %c0_i32_0 = arith.constant 0 : i32
    %c0_i32_1 = arith.constant 0 : i32
    return %c0_i32, %c0_i32_0 : i32, i32
  }
  func.func @transform_3(%arg0: i32) -> (i32, i32) {
    %c0_i32 = arith.constant 0 : i32
    %c0_i32_0 = arith.constant 0 : i32
    %c0_i32_1 = arith.constant 0 : i32
    return %c0_i32, %c0_i32_0 : i32, i32
  }
  func.func @transform_4(%arg0: i32) -> (i32, i32, i32) {
    %c0_i32 = arith.constant 0 : i32
    %c0_i32_0 = arith.constant 0 : i32
    %c0_i32_1 = arith.constant 0 : i32
    return %arg0, %c0_i32, %c0_i32_0 : i32, i32, i32
  }
}

</mosaic_0001>

<llo_original>
// kernel: rnn_model_forward.2
$region0: #{rnn_model_forward.2}
  #allocation0 [shape = 'u32[]', space=smem, size = 0x4, offset = 0x4, fixed_abs, tag = 'smem constant byte address 0x4 - core index']
  #allocation1 [shape = 'u32[144,128]{1,0:T(1,128)}', space=vmem, size = 0x12000, scoped, tag = 'internal scratch']
  #allocation2 [shape = 'f32[8,128]{1,0:T(8,128)}', space=vmem, size = 0x1000, scoped, tag = 'scratch operand']
  #allocation3 [shape = 'f32[64,128]{1,0:T(8,128)}', space=vmem, size = 0x8000, scoped, tag = 'scratch operand']
  %s0 = inlined_call_operand.vmem [shape: bf16[8,8,128], index: 0, kind: input, shape index: {}]
  %s1 = inlined_call_operand.hbm [shape: f32[128,128], index: 1, kind: input, shape index: {}]
  %s2 = inlined_call_operand.vmem [shape: f32[1,128], index: 2, kind: input, shape index: {}]
  %s3 = inlined_call_operand.hbm [shape: f32[128,128], index: 3, kind: input, shape index: {}]
  %s4 = inlined_call_operand.vmem [shape: bf16[8,8,128], index: 4, kind: output, shape index: {}]
  %s5 = sld [smem:[#allocation0]]
  $region38: #{rnn_model_forward.2} parent=0
    _
  %s7 = ssub.s32 1, %s5
  %s8 = scalar_select 0, %s7, %s5
  $region1: #{rnn_model_forward.2} parent=0
    #allocation4 [shape = 'u8[65536]{0}', space=vmem, size = 0x10000, scoped, tag = 'input window, operand 1, single buffered']
    #allocation5 [shape = 's32[1]{0}', space=sflag, size = 0x4, scoped, tag = 'scoped memory for rnn_model_forward.2']
    #allocation6 [shape = 'u8[65536]{0}', space=vmem, size = 0x10000, scoped, tag = 'input window, operand 3, single buffered']
    #allocation7 [shape = 's32[1]{0}', space=sflag, size = 0x4, scoped, tag = 'scoped memory for rnn_model_forward.2']
    %9 = vsyncpa [#allocation5], 0
    %10 = vsyncpa [#allocation7], 0
    // Predicated region
    $region2: #{rnn_model_forward.2} parent=1 // pred_check
      _
    $region3: #{rnn_model_forward.2} parent=1 // pred_check_branch
      %12 = sbr.rel (0) target = $region5
    $region4: #{rnn_model_forward.2} parent=1 // pred_region
      _
    $region5: #{rnn_model_forward.2} parent=1 // pred_fallthru
      _
    // Predicated region
    $region6: #{rnn_model_forward.2} parent=1 // pred_check
      _
    $region7: #{rnn_model_forward.2} parent=1 // pred_check_branch
      %14 = sbr.rel (0) target = $region9
    $region8: #{rnn_model_forward.2} parent=1 // pred_region
      %s16 = ssub.s32 2048, 2048
      %17 = vsyncadd [#allocation5], %s16
      %s18 = sshll.u32 [#allocation4], 4
      %s19 = int_to_ptr.vmem [resolvable:$true] %s18
      %24 = dma.hbm_to_vmem [thread:$0]  %s1, 2048, %s19, [#allocation5], 128, 128, 8
    $region9: #{rnn_model_forward.2} parent=1 // pred_fallthru
      _
    // Predicated region
    $region10: #{rnn_model_forward.2} parent=1 // pred_check
      _
    $region11: #{rnn_model_forward.2} parent=1 // pred_check_branch
      %26 = sbr.rel (0) target = $region13
    $region12: #{rnn_model_forward.2} parent=1 // pred_region
      _
    $region13: #{rnn_model_forward.2} parent=1 // pred_fallthru
      _
    // Predicated region
    $region14: #{rnn_model_forward.2} parent=1 // pred_check
      _
    $region15: #{rnn_model_forward.2} parent=1 // pred_check_branch
      %28 = sbr.rel (0) target = $region17
    $region16: #{rnn_model_forward.2} parent=1 // pred_region
      %s30 = ssub.s32 2048, 2048
      %31 = vsyncadd [#allocation7], %s30
      %s32 = sshll.u32 [#allocation6], 4
      %s33 = int_to_ptr.vmem [resolvable:$true] %s32
      %38 = dma.hbm_to_vmem [thread:$0]  %s3, 2048, %s33, [#allocation7], 128, 128, 8
    $region17: #{rnn_model_forward.2} parent=1 // pred_fallthru
      _
    // Predicated region
    $region18: #{rnn_model_forward.2} parent=1 // pred_check
      _
    $region19: #{rnn_model_forward.2} parent=1 // pred_check_branch
      %40 = sbr.rel (0) target = $region21
    $region20: #{rnn_model_forward.2} parent=1 // pred_region
      %41 = dma.done [#allocation5], 2048
    $region21: #{rnn_model_forward.2} parent=1 // pred_fallthru
      _
    // Predicated region
    $region22: #{rnn_model_forward.2} parent=1 // pred_check
      _
    $region23: #{rnn_model_forward.2} parent=1 // pred_check_branch
      %43 = sbr.rel (0) target = $region25
    $region24: #{rnn_model_forward.2} parent=1 // pred_region
      %44 = dma.done [#allocation7], 2048
    $region25: #{rnn_model_forward.2} parent=1 // pred_fallthru
      _
    %p45 = scmp.eq.s32.totalorder 0, 0
    // Predicated region
    $region26: #{rnn_model_forward.2} parent=1 // pred_check
      %p46 = pneg %p45
    $region27: #{rnn_model_forward.2} parent=1 // pred_check_branch
      %48 = sbr.rel (%p46) target = $region29
    $region28: #{rnn_model_forward.2} parent=1 // pred_region
      %49 = vst [vmem:[#allocation2] sm:$0xff] 0.0
    $region29: #{rnn_model_forward.2} parent=1 // pred_fallthru
      _
    %v50 = vld [vmem:[%s0] sm:$0xf]
    %v51 = vld [vmem:[%s0 + $0x4] sm:$0xf]
    %v52 = vld [vmem:[%s0 + $0x8] sm:$0xf]
    %v53 = vld [vmem:[%s0 + $0xc] sm:$0xf]
    %v54 = vld [vmem:[%s0 + $0x10] sm:$0xf]
    %v55 = vld [vmem:[%s0 + $0x14] sm:$0xf]
    %v56 = vld [vmem:[%s0 + $0x18] sm:$0xf]
    %v57 = vld [vmem:[%s0 + $0x1c] sm:$0xf]
    %v58 = vunpack.c.l.bf16 %v50
    %v59 = vunpack.c.l.bf16 %v51
    %v60 = vunpack.c.l.bf16 %v52
    %v61 = vunpack.c.l.bf16 %v53
    %v62 = vunpack.c.l.bf16 %v54
    %v63 = vunpack.c.l.bf16 %v55
    %v64 = vunpack.c.l.bf16 %v56
    %v65 = vunpack.c.l.bf16 %v57
    %v66 = vld [vmem:[#allocation4] sm:$0xff]
    %v67 = vld [vmem:[#allocation4 + $0x8] sm:$0xff]
    %v68 = vld [vmem:[#allocation4 + $0x10] sm:$0xff]
    %v69 = vld [vmem:[#allocation4 + $0x18] sm:$0xff]
    %v70 = vld [vmem:[#allocation4 + $0x20] sm:$0xff]
    %v71 = vld [vmem:[#allocation4 + $0x28] sm:$0xff]
    %v72 = vld [vmem:[#allocation4 + $0x30] sm:$0xff]
    %v73 = vld [vmem:[#allocation4 + $0x38] sm:$0xff]
    %v74 = vld [vmem:[#allocation4 + $0x40] sm:$0xff]
    %v75 = vld [vmem:[#allocation4 + $0x48] sm:$0xff]
    %v76 = vld [vmem:[#allocation4 + $0x50] sm:$0xff]
    %v77 = vld [vmem:[#allocation4 + $0x58] sm:$0xff]
    %v78 = vld [vmem:[#allocation4 + $0x60] sm:$0xff]
    %v79 = vld [vmem:[#allocation4 + $0x68] sm:$0xff]
    %v80 = vld [vmem:[#allocation4 + $0x70] sm:$0xff]
    %v81 = vld [vmem:[#allocation4 + $0x78] sm:$0xff]
    %v82 = vld [vmem:[%s2] sm:$0x1]
    %v84 = vlaneseq
    %v85 = vshrl.u32 %v84, 7
    %v86 = vsub.s32 0, %v85
    %v87 = vrot.slane %v82, %v86
    %89 = vmatprep.subr.mxu0 0.0
    %90 = vmatpush1.msra.mxu0 %v66
    %91 = vmatprep.subr.mxu0 0.0
    %92 = vmatpush1.msra.mxu0 %v67
    %93 = vmatprep.subr.mxu0 0.0
    %94 = vmatpush1.msra.mxu0 %v68
    %95 = vmatprep.subr.mxu0 0.0
    %96 = vmatpush1.msra.mxu0 %v69
    %97 = vmatprep.subr.mxu0 0.0
    %98 = vmatpush1.msra.mxu0 %v70
    %99 = vmatprep.subr.mxu0 0.0
    %100 = vmatpush1.msra.mxu0 %v71
    %101 = vmatprep.subr.mxu0 0.0
    %102 = vmatpush1.msra.mxu0 %v72
    %103 = vmatprep.subr.mxu0 0.0
    %104 = vmatpush1.msra.mxu0 %v73
    %105 = vmatprep.subr.mxu0 0.0
    %106 = vmatpush1.msra.mxu0 %v74
    %107 = vmatprep.subr.mxu0 0.0
    %108 = vmatpush1.msra.mxu0 %v75
    %109 = vmatprep.subr.mxu0 0.0
    %110 = vmatpush1.msra.mxu0 %v76
    %111 = vmatprep.subr.mxu0 0.0
    %112 = vmatpush1.msra.mxu0 %v77
    %113 = vmatprep.subr.mxu0 0.0
    %114 = vmatpush1.msra.mxu0 %v78
    %115 = vmatprep.subr.mxu0 0.0
    %116 = vmatpush1.msra.mxu0 %v79
    %117 = vmatprep.subr.mxu0 0.0
    %118 = vmatpush1.msra.mxu0 %v80
    %119 = vmatprep.subr.mxu0 0.0
    %120 = vmatpush1.msra.mxu0 %v81
    %121 = vmatprep.subr.mxu0 0.0
    %122 = vmatpush1.msra.mxu0 0.0
    %123 = vmatprep.subr.mxu0 0.0
    %124 = vmatpush1.msra.mxu0 0.0
    %125 = vmatprep.subr.mxu0 0.0
    %126 = vmatpush1.msra.mxu0 0.0
    %127 = vmatprep.subr.mxu0 0.0
    %128 = vmatpush1.msra.mxu0 0.0
    %129 = vmatprep.subr.mxu0 0.0
    %130 = vmatpush1.msra.mxu0 0.0
    %131 = vmatprep.subr.mxu0 0.0
    %132 = vmatpush1.msra.mxu0 0.0
    %133 = vmatprep.subr.mxu0 0.0
    %134 = vmatpush1.msra.mxu0 0.0
    %135 = vmatprep.subr.mxu0 0.0
    %136 = vmatpush1.msra.mxu0 0.0
    %137 = vmatprep.subr.mxu0 0.0
    %138 = vmatpush1.msra.mxu0 0.0
    %139 = vmatprep.subr.mxu0 0.0
    %140 = vmatpush1.msra.mxu0 0.0
    %141 = vmatprep.subr.mxu0 0.0
    %142 = vmatpush1.msra.mxu0 0.0
    %143 = vmatprep.subr.mxu0 0.0
    %144 = vmatpush1.msra.mxu0 0.0
    %145 = vmatprep.subr.mxu0 0.0
    %146 = vmatpush1.msra.mxu0 0.0
    %147 = vmatprep.subr.mxu0 0.0
    %148 = vmatpush1.msra.mxu0 0.0
    %149 = vmatprep.subr.mxu0 0.0
    %150 = vmatpush1.msra.mxu0 0.0
    %151 = vmatprep.subr.mxu0 0.0
    %152 = vmatpush1.msra.mxu0 0.0
    %153 = vmatprep.mubr.f32.mxu0 0.0
    %154 = vmatmul.mubr.f32.gmra.mrb[0].mxu0 %v58
    %v155 = vpop.f32.mrb[0].mxu0
    %v156 = vadd.f32 %v87, %v155
    %v157 = vpop.f32.mrb[0].mxu0
    %158 = vmatprep.mubr.f32.mxu0 0.0
    %159 = vmatmul.mubr.f32.gmra.mrb[0].mxu0 %v59
    %v160 = vpop.f32.mrb[0].mxu0
    %v161 = vadd.f32 %v87, %v160
    %v162 = vpop.f32.mrb[0].mxu0
    %163 = vmatprep.mubr.f32.mxu0 0.0
    %164 = vmatmul.mubr.f32.gmra.mrb[0].mxu0 %v60
    %v165 = vpop.f32.mrb[0].mxu0
    %v166 = vadd.f32 %v87, %v165
    %v167 = vpop.f32.mrb[0].mxu0
    %168 = vmatprep.mubr.f32.mxu0 0.0
    %169 = vmatmul.mubr.f32.gmra.mrb[0].mxu0 %v61
    %v170 = vpop.f32.mrb[0].mxu0
    %v171 = vadd.f32 %v87, %v170
    %v172 = vpop.f32.mrb[0].mxu0
    %173 = vmatprep.mubr.f32.mxu0 0.0
    %174 = vmatmul.mubr.f32.gmra.mrb[0].mxu0 %v62
    %v175 = vpop.f32.mrb[0].mxu0
    %v176 = vadd.f32 %v87, %v175
    %v177 = vpop.f32.mrb[0].mxu0
    %178 = vmatprep.mubr.f32.mxu0 0.0
    %179 = vmatmul.mubr.f32.gmra.mrb[0].mxu0 %v63
    %v180 = vpop.f32.mrb[0].mxu0
    %v181 = vadd.f32 %v87, %v180
    %v182 = vpop.f32.mrb[0].mxu0
    %183 = vmatprep.mubr.f32.mxu0 0.0
    %184 = vmatmul.mubr.f32.gmra.mrb[0].mxu0 %v64
    %v185 = vpop.f32.mrb[0].mxu0
    %v186 = vadd.f32 %v87, %v185
    %v187 = vpop.f32.mrb[0].mxu0
    %188 = vmatprep.mubr.f32.mxu0 0.0
    %189 = vmatmul.mubr.f32.gmra.mrb[0].mxu0 %v65
    %v190 = vpop.f32.mrb[0].mxu0
    %v191 = vadd.f32 %v87, %v190
    %v192 = vpop.f32.mrb[0].mxu0
    %193 = vdwg.mxu0
    %194 = vst [vmem:[#allocation3] sm:$0xff] %v156
    %195 = vst [vmem:[#allocation3 + $0x8] sm:$0xff] %v161
    %196 = vst [vmem:[#allocation3 + $0x10] sm:$0xff] %v166
    %197 = vst [vmem:[#allocation3 + $0x18] sm:$0xff] %v171
    %198 = vst [vmem:[#allocation3 + $0x20] sm:$0xff] %v176
    %199 = vst [vmem:[#allocation3 + $0x28] sm:$0xff] %v181
    %200 = vst [vmem:[#allocation3 + $0x30] sm:$0xff] %v186
    %201 = vst [vmem:[#allocation3 + $0x38] sm:$0xff] %v191
    %v202 = vld [vmem:[#allocation2] sm:$0xff]
    %v203 = vld [vmem:[#allocation3] sm:$0xff]
    %v204 = vld [vmem:[#allocation6] sm:$0xff]
    %v205 = vld [vmem:[#allocation6 + $0x8] sm:$0xff]
    %v206 = vld [vmem:[#allocation6 + $0x10] sm:$0xff]
    %v207 = vld [vmem:[#allocation6 + $0x18] sm:$0xff]
    %v208 = vld [vmem:[#allocation6 + $0x20] sm:$0xff]
    %v209 = vld [vmem:[#allocation6 + $0x28] sm:$0xff]
    %v210 = vld [vmem:[#allocation6 + $0x30] sm:$0xff]
    %v211 = vld [vmem:[#allocation6 + $0x38] sm:$0xff]
    %v212 = vld [vmem:[#allocation6 + $0x40] sm:$0xff]
    %v213 = vld [vmem:[#allocation6 + $0x48] sm:$0xff]
    %v214 = vld [vmem:[#allocation6 + $0x50] sm:$0xff]
    %v215 = vld [vmem:[#allocation6 + $0x58] sm:$0xff]
    %v216 = vld [vmem:[#allocation6 + $0x60] sm:$0xff]
    %v217 = vld [vmem:[#allocation6 + $0x68] sm:$0xff]
    %v218 = vld [vmem:[#allocation6 + $0x70] sm:$0xff]
    %v219 = vld [vmem:[#allocation6 + $0x78] sm:$0xff]
    %220 = vmatprep.subr.mxu0 0.0
    %221 = vmatpush1.msra.mxu0 %v204
    %222 = vmatprep.subr.mxu0 0.0
    %223 = vmatpush1.msra.mxu0 %v205
    %224 = vmatprep.subr.mxu0 0.0
    %225 = vmatpush1.msra.mxu0 %v206
    %226 = vmatprep.subr.mxu0 0.0
    %227 = vmatpush1.msra.mxu0 %v207
    %228 = vmatprep.subr.mxu0 0.0
    %229 = vmatpush1.msra.mxu0 %v208
    %230 = vmatprep.subr.mxu0 0.0
    %231 = vmatpush1.msra.mxu0 %v209
    %232 = vmatprep.subr.mxu0 0.0
    %233 = vmatpush1.msra.mxu0 %v210
    %234 = vmatprep.subr.mxu0 0.0
    %235 = vmatpush1.msra.mxu0 %v211
    %236 = vmatprep.subr.mxu0 0.0
    %237 = vmatpush1.msra.mxu0 %v212
    %238 = vmatprep.subr.mxu0 0.0
    %239 = vmatpush1.msra.mxu0 %v213
    %240 = vmatprep.subr.mxu0 0.0
    %241 = vmatpush1.msra.mxu0 %v214
    %242 = vmatprep.subr.mxu0 0.0
    %243 = vmatpush1.msra.mxu0 %v215
    %244 = vmatprep.subr.mxu0 0.0
    %245 = vmatpush1.msra.mxu0 %v216
    %246 = vmatprep.subr.mxu0 0.0
    %247 = vmatpush1.msra.mxu0 %v217
    %248 = vmatprep.subr.mxu0 0.0
    %249 = vmatpush1.msra.mxu0 %v218
    %250 = vmatprep.subr.mxu0 0.0
    %251 = vmatpush1.msra.mxu0 %v219
    %252 = vmatprep.subr.mxu0 0.0
    %253 = vmatpush1.msra.mxu0 0.0
    %254 = vmatprep.subr.mxu0 0.0
    %255 = vmatpush1.msra.mxu0 0.0
    %256 = vmatprep.subr.mxu0 0.0
    %257 = vmatpush1.msra.mxu0 0.0
    %258 = vmatprep.subr.mxu0 0.0
    %259 = vmatpush1.msra.mxu0 0.0
    %260 = vmatprep.subr.mxu0 0.0
    %261 = vmatpush1.msra.mxu0 0.0
    %262 = vmatprep.subr.mxu0 0.0
    %263 = vmatpush1.msra.mxu0 0.0
    %264 = vmatprep.subr.mxu0 0.0
    %265 = vmatpush1.msra.mxu0 0.0
    %266 = vmatprep.subr.mxu0 0.0
    %267 = vmatpush1.msra.mxu0 0.0
    %268 = vmatprep.subr.mxu0 0.0
    %269 = vmatpush1.msra.mxu0 0.0
    %270 = vmatprep.subr.mxu0 0.0
    %271 = vmatpush1.msra.mxu0 0.0
    %272 = vmatprep.subr.mxu0 0.0
    %273 = vmatpush1.msra.mxu0 0.0
    %274 = vmatprep.subr.mxu0 0.0
    %275 = vmatpush1.msra.mxu0 0.0
    %276 = vmatprep.subr.mxu0 0.0
    %277 = vmatpush1.msra.mxu0 0.0
    %278 = vmatprep.subr.mxu0 0.0
    %279 = vmatpush1.msra.mxu0 0.0
    %280 = vmatprep.subr.mxu0 0.0
    %281 = vmatpush1.msra.mxu0 0.0
    %282 = vmatprep.subr.mxu0 0.0
    %283 = vmatpush1.msra.mxu0 0.0
    %284 = vmatprep.mubr.f32.mxu0 0.0
    %285 = vmatmul.mubr.f32.gmra.mrb[0].mxu0 %v202
    %v286 = vpop.f32.mrb[0].mxu0
    %v287 = vadd.f32 0.0, %v286
    %v288 = vpop.f32.mrb[0].mxu0
    %289 = vdwg.mxu0
    %v290 = vadd.f32 %v203, %v287
    %v291 = vtanh.pop %v290
    %v292 = vpack.c.bf16 %v291, %v291
    %293 = vst [vmem:[%s4] sm:$0xf] %v292
    %v294 = vld [vmem:[#allocation3 + $0x8] sm:$0xff]
    %v295 = vld [vmem:[#allocation6] sm:$0xff]
    %v296 = vld [vmem:[#allocation6 + $0x8] sm:$0xff]
    %v297 = vld [vmem:[#allocation6 + $0x10] sm:$0xff]
    %v298 = vld [vmem:[#allocation6 + $0x18] sm:$0xff]
    %v299 = vld [vmem:[#allocation6 + $0x20] sm:$0xff]
    %v300 = vld [vmem:[#allocation6 + $0x28] sm:$0xff]
    %v301 = vld [vmem:[#allocation6 + $0x30] sm:$0xff]
    %v302 = vld [vmem:[#allocation6 + $0x38] sm:$0xff]
    %v303 = vld [vmem:[#allocation6 + $0x40] sm:$0xff]
    %v304 = vld [vmem:[#allocation6 + $0x48] sm:$0xff]
    %v305 = vld [vmem:[#allocation6 + $0x50] sm:$0xff]
    %v306 = vld [vmem:[#allocation6 + $0x58] sm:$0xff]
    %v307 = vld [vmem:[#allocation6 + $0x60] sm:$0xff]
    %v308 = vld [vmem:[#allocation6 + $0x68] sm:$0xff]
    %v309 = vld [vmem:[#allocation6 + $0x70] sm:$0xff]
    %v310 = vld [vmem:[#allocation6 + $0x78] sm:$0xff]
    %311 = vmatprep.subr.mxu0 0.0
    %312 = vmatpush1.msra.mxu0 %v295
    %313 = vmatprep.subr.mxu0 0.0
    %314 = vmatpush1.msra.mxu0 %v296
    %315 = vmatprep.subr.mxu0 0.0
    %316 = vmatpush1.msra.mxu0 %v297
    %317 = vmatprep.subr.mxu0 0.0
    %318 = vmatpush1.msra.mxu0 %v298
    %319 = vmatprep.subr.mxu0 0.0
    %320 = vmatpush1.msra.mxu0 %v299
    %321 = vmatprep.subr.mxu0 0.0
    %322 = vmatpush1.msra.mxu0 %v300
    %323 = vmatprep.subr.mxu0 0.0
    %324 = vmatpush1.msra.mxu0 %v301
    %325 = vmatprep.subr.mxu0 0.0
    %326 = vmatpush1.msra.mxu0 %v302
    %327 = vmatprep.subr.mxu0 0.0
    %328 = vmatpush1.msra.mxu0 %v303
    %329 = vmatprep.subr.mxu0 0.0
    %330 = vmatpush1.msra.mxu0 %v304
    %331 = vmatprep.subr.mxu0 0.0
    %332 = vmatpush1.msra.mxu0 %v305
    %333 = vmatprep.subr.mxu0 0.0
    %334 = vmatpush1.msra.mxu0 %v306
    %335 = vmatprep.subr.mxu0 0.0
    %336 = vmatpush1.msra.mxu0 %v307
    %337 = vmatprep.subr.mxu0 0.0
    %338 = vmatpush1.msra.mxu0 %v308
    %339 = vmatprep.subr.mxu0 0.0
    %340 = vmatpush1.msra.mxu0 %v309
    %341 = vmatprep.subr.mxu0 0.0
    %342 = vmatpush1.msra.mxu0 %v310
    %343 = vmatprep.subr.mxu0 0.0
    %344 = vmatpush1.msra.mxu0 0.0
    %345 = vmatprep.subr.mxu0 0.0
    %346 = vmatpush1.msra.mxu0 0.0
    %347 = vmatprep.subr.mxu0 0.0
    %348 = vmatpush1.msra.mxu0 0.0
    %349 = vmatprep.subr.mxu0 0.0
    %350 = vmatpush1.msra.mxu0 0.0
    %351 = vmatprep.subr.mxu0 0.0
    %352 = vmatpush1.msra.mxu0 0.0
    %353 = vmatprep.subr.mxu0 0.0
    %354 = vmatpush1.msra.mxu0 0.0
    %355 = vmatprep.subr.mxu0 0.0
    %356 = vmatpush1.msra.mxu0 0.0
    %357 = vmatprep.subr.mxu0 0.0
    %358 = vmatpush1.msra.mxu0 0.0
    %359 = vmatprep.subr.mxu0 0.0
    %360 = vmatpush1.msra.mxu0 0.0
    %361 = vmatprep.subr.mxu0 0.0
    %362 = vmatpush1.msra.mxu0 0.0
    %363 = vmatprep.subr.mxu0 0.0
    %364 = vmatpush1.msra.mxu0 0.0
    %365 = vmatprep.subr.mxu0 0.0
    %366 = vmatpush1.msra.mxu0 0.0
    %367 = vmatprep.subr.mxu0 0.0
    %368 = vmatpush1.msra.mxu0 0.0
    %369 = vmatprep.subr.mxu0 0.0
    %370 = vmatpush1.msra.mxu0 0.0
    %371 = vmatprep.subr.mxu0 0.0
    %372 = vmatpush1.msra.mxu0 0.0
    %373 = vmatprep.subr.mxu0 0.0
    %374 = vmatpush1.msra.mxu0 0.0
    %375 = vmatprep.mubr.f32.mxu0 0.0
    %376 = vmatmul.mubr.f32.gmra.mrb[0].mxu0 %v291
    %v377 = vpop.f32.mrb[0].mxu0
    %v378 = vadd.f32 0.0, %v377
    %v379 = vpop.f32.mrb[0].mxu0
    %380 = vdwg.mxu0
    %v381 = vadd.f32 %v294, %v378
    %v382 = vtanh.pop %v381
    %v383 = vpack.c.bf16 %v382, %v382
    %s384 = scalar_lea.vmem %s4, 4
    %385 = vst [vmem:[%s384] sm:$0xf] %v383
    %v386 = vld [vmem:[#allocation3 + $0x10] sm:$0xff]
    %v387 = vld [vmem:[#allocation6] sm:$0xff]
    %v388 = vld [vmem:[#allocation6 + $0x8] sm:$0xff]
    %v389 = vld [vmem:[#allocation6 + $0x10] sm:$0xff]
    %v390 = vld [vmem:[#allocation6 + $0x18] sm:$0xff]
    %v391 = vld [vmem:[#allocation6 + $0x20] sm:$0xff]
    %v392 = vld [vmem:[#allocation6 + $0x28] sm:$0xff]
    %v393 = vld [vmem:[#allocation6 + $0x30] sm:$0xff]
    %v394 = vld [vmem:[#allocation6 + $0x38] sm:$0xff]
    %v395 = vld [vmem:[#allocation6 + $0x40] sm:$0xff]
    %v396 = vld [vmem:[#allocation6 + $0x48] sm:$0xff]
    %v397 = vld [vmem:[#allocation6 + $0x50] sm:$0xff]
    %v398 = vld [vmem:[#allocation6 + $0x58] sm:$0xff]
    %v399 = vld [vmem:[#allocation6 + $0x60] sm:$0xff]
    %v400 = vld [vmem:[#allocation6 + $0x68] sm:$0xff]
    %v401 = vld [vmem:[#allocation6 + $0x70] sm:$0xff]
    %v402 = vld [vmem:[#allocation6 + $0x78] sm:$0xff]
    %403 = vmatprep.subr.mxu0 0.0
    %404 = vmatpush1.msra.mxu0 %v387
    %405 = vmatprep.subr.mxu0 0.0
    %406 = vmatpush1.msra.mxu0 %v388
    %407 = vmatprep.subr.mxu0 0.0
    %408 = vmatpush1.msra.mxu0 %v389
    %409 = vmatprep.subr.mxu0 0.0
    %410 = vmatpush1.msra.mxu0 %v390
    %411 = vmatprep.subr.mxu0 0.0
    %412 = vmatpush1.msra.mxu0 %v391
    %413 = vmatprep.subr.mxu0 0.0
    %414 = vmatpush1.msra.mxu0 %v392
    %415 = vmatprep.subr.mxu0 0.0
    %416 = vmatpush1.msra.mxu0 %v393
    %417 = vmatprep.subr.mxu0 0.0
    %418 = vmatpush1.msra.mxu0 %v394
    %419 = vmatprep.subr.mxu0 0.0
    %420 = vmatpush1.msra.mxu0 %v395
    %421 = vmatprep.subr.mxu0 0.0
    %422 = vmatpush1.msra.mxu0 %v396
    %423 = vmatprep.subr.mxu0 0.0
    %424 = vmatpush1.msra.mxu0 %v397
    %425 = vmatprep.subr.mxu0 0.0
    %426 = vmatpush1.msra.mxu0 %v398
    %427 = vmatprep.subr.mxu0 0.0
    %428 = vmatpush1.msra.mxu0 %v399
    %429 = vmatprep.subr.mxu0 0.0
    %430 = vmatpush1.msra.mxu0 %v400
    %431 = vmatprep.subr.mxu0 0.0
    %432 = vmatpush1.msra.mxu0 %v401
    %433 = vmatprep.subr.mxu0 0.0
    %434 = vmatpush1.msra.mxu0 %v402
    %435 = vmatprep.subr.mxu0 0.0
    %436 = vmatpush1.msra.mxu0 0.0
    %437 = vmatprep.subr.mxu0 0.0
    %438 = vmatpush1.msra.mxu0 0.0
    %439 = vmatprep.subr.mxu0 0.0
    %440 = vmatpush1.msra.mxu0 0.0
    %441 = vmatprep.subr.mxu0 0.0
    %442 = vmatpush1.msra.mxu0 0.0
    %443 = vmatprep.subr.mxu0 0.0
    %444 = vmatpush1.msra.mxu0 0.0
    %445 = vmatprep.subr.mxu0 0.0
    %446 = vmatpush1.msra.mxu0 0.0
    %447 = vmatprep.subr.mxu0 0.0
    %448 = vmatpush1.msra.mxu0 0.0
    %449 = vmatprep.subr.mxu0 0.0
    %450 = vmatpush1.msra.mxu0 0.0
    %451 = vmatprep.subr.mxu0 0.0
    %452 = vmatpush1.msra.mxu0 0.0
    %453 = vmatprep.subr.mxu0 0.0
    %454 = vmatpush1.msra.mxu0 0.0
    %455 = vmatprep.subr.mxu0 0.0
    %456 = vmatpush1.msra.mxu0 0.0
    %457 = vmatprep.subr.mxu0 0.0
    %458 = vmatpush1.msra.mxu0 0.0
    %459 = vmatprep.subr.mxu0 0.0
    %460 = vmatpush1.msra.mxu0 0.0
    %461 = vmatprep.subr.mxu0 0.0
    %462 = vmatpush1.msra.mxu0 0.0
    %463 = vmatprep.subr.mxu0 0.0
    %464 = vmatpush1.msra.mxu0 0.0
    %465 = vmatprep.subr.mxu0 0.0
    %466 = vmatpush1.msra.mxu0 0.0
    %467 = vmatprep.mubr.f32.mxu0 0.0
    %468 = vmatmul.mubr.f32.gmra.mrb[0].mxu0 %v382
    %v469 = vpop.f32.mrb[0].mxu0
    %v470 = vadd.f32 0.0, %v469
    %v471 = vpop.f32.mrb[0].mxu0
    %472 = vdwg.mxu0
    %v473 = vadd.f32 %v386, %v470
    %v474 = vtanh.pop %v473
    %v475 = vpack.c.bf16 %v474, %v474
    %s476 = scalar_lea.vmem %s4, 8
    %477 = vst [vmem:[%s476] sm:$0xf] %v475
    %v478 = vld [vmem:[#allocation3 + $0x18] sm:$0xff]
    %v479 = vld [vmem:[#allocation6] sm:$0xff]
    %v480 = vld [vmem:[#allocation6 + $0x8] sm:$0xff]
    %v481 = vld [vmem:[#allocation6 + $0x10] sm:$0xff]
    %v482 = vld [vmem:[#allocation6 + $0x18] sm:$0xff]
    %v483 = vld [vmem:[#allocation6 + $0x20] sm:$0xff]
    %v484 = vld [vmem:[#allocation6 + $0x28] sm:$0xff]
    %v485 = vld [vmem:[#allocation6 + $0x30] sm:$0xff]
    %v486 = vld [vmem:[#allocation6 + $0x38] sm:$0xff]
    %v487 = vld [vmem:[#allocation6 + $0x40] sm:$0xff]
    %v488 = vld [vmem:[#allocation6 + $0x48] sm:$0xff]
    %v489 = vld [vmem:[#allocation6 + $0x50] sm:$0xff]
    %v490 = vld [vmem:[#allocation6 + $0x58] sm:$0xff]
    %v491 = vld [vmem:[#allocation6 + $0x60] sm:$0xff]
    %v492 = vld [vmem:[#allocation6 + $0x68] sm:$0xff]
    %v493 = vld [vmem:[#allocation6 + $0x70] sm:$0xff]
    %v494 = vld [vmem:[#allocation6 + $0x78] sm:$0xff]
    %495 = vmatprep.subr.mxu0 0.0
    %496 = vmatpush1.msra.mxu0 %v479
    %497 = vmatprep.subr.mxu0 0.0
    %498 = vmatpush1.msra.mxu0 %v480
    %499 = vmatprep.subr.mxu0 0.0
    %500 = vmatpush1.msra.mxu0 %v481
    %501 = vmatprep.subr.mxu0 0.0
    %502 = vmatpush1.msra.mxu0 %v482
    %503 = vmatprep.subr.mxu0 0.0
    %504 = vmatpush1.msra.mxu0 %v483
    %505 = vmatprep.subr.mxu0 0.0
    %506 = vmatpush1.msra.mxu0 %v484
    %507 = vmatprep.subr.mxu0 0.0
    %508 = vmatpush1.msra.mxu0 %v485
    %509 = vmatprep.subr.mxu0 0.0
    %510 = vmatpush1.msra.mxu0 %v486
    %511 = vmatprep.subr.mxu0 0.0
    %512 = vmatpush1.msra.mxu0 %v487
    %513 = vmatprep.subr.mxu0 0.0
    %514 = vmatpush1.msra.mxu0 %v488
    %515 = vmatprep.subr.mxu0 0.0
    %516 = vmatpush1.msra.mxu0 %v489
    %517 = vmatprep.subr.mxu0 0.0
    %518 = vmatpush1.msra.mxu0 %v490
    %519 = vmatprep.subr.mxu0 0.0
    %520 = vmatpush1.msra.mxu0 %v491
    %521 = vmatprep.subr.mxu0 0.0
    %522 = vmatpush1.msra.mxu0 %v492
    %523 = vmatprep.subr.mxu0 0.0
    %524 = vmatpush1.msra.mxu0 %v493
    %525 = vmatprep.subr.mxu0 0.0
    %526 = vmatpush1.msra.mxu0 %v494
    %527 = vmatprep.subr.mxu0 0.0
    %528 = vmatpush1.msra.mxu0 0.0
    %529 = vmatprep.subr.mxu0 0.0
    %530 = vmatpush1.msra.mxu0 0.0
    %531 = vmatprep.subr.mxu0 0.0
    %532 = vmatpush1.msra.mxu0 0.0
    %533 = vmatprep.subr.mxu0 0.0
    %534 = vmatpush1.msra.mxu0 0.0
    %535 = vmatprep.subr.mxu0 0.0
    %536 = vmatpush1.msra.mxu0 0.0
    %537 = vmatprep.subr.mxu0 0.0
    %538 = vmatpush1.msra.mxu0 0.0
    %539 = vmatprep.subr.mxu0 0.0
    %540 = vmatpush1.msra.mxu0 0.0
    %541 = vmatprep.subr.mxu0 0.0
    %542 = vmatpush1.msra.mxu0 0.0
    %543 = vmatprep.subr.mxu0 0.0
    %544 = vmatpush1.msra.mxu0 0.0
    %545 = vmatprep.subr.mxu0 0.0
    %546 = vmatpush1.msra.mxu0 0.0
    %547 = vmatprep.subr.mxu0 0.0
    %548 = vmatpush1.msra.mxu0 0.0
    %549 = vmatprep.subr.mxu0 0.0
    %550 = vmatpush1.msra.mxu0 0.0
    %551 = vmatprep.subr.mxu0 0.0
    %552 = vmatpush1.msra.mxu0 0.0
    %553 = vmatprep.subr.mxu0 0.0
    %554 = vmatpush1.msra.mxu0 0.0
    %555 = vmatprep.subr.mxu0 0.0
    %556 = vmatpush1.msra.mxu0 0.0
    %557 = vmatprep.subr.mxu0 0.0
    %558 = vmatpush1.msra.mxu0 0.0
    %559 = vmatprep.mubr.f32.mxu0 0.0
    %560 = vmatmul.mubr.f32.gmra.mrb[0].mxu0 %v474
    %v561 = vpop.f32.mrb[0].mxu0
    %v562 = vadd.f32 0.0, %v561
    %v563 = vpop.f32.mrb[0].mxu0
    %564 = vdwg.mxu0
    %v565 = vadd.f32 %v478, %v562
    %v566 = vtanh.pop %v565
    %v567 = vpack.c.bf16 %v566, %v566
    %s568 = scalar_lea.vmem %s4, 12
    %569 = vst [vmem:[%s568] sm:$0xf] %v567
    %v570 = vld [vmem:[#allocation3 + $0x20] sm:$0xff]
    %v571 = vld [vmem:[#allocation6] sm:$0xff]
    %v572 = vld [vmem:[#allocation6 + $0x8] sm:$0xff]
    %v573 = vld [vmem:[#allocation6 + $0x10] sm:$0xff]
    %v574 = vld [vmem:[#allocation6 + $0x18] sm:$0xff]
    %v575 = vld [vmem:[#allocation6 + $0x20] sm:$0xff]
    %v576 = vld [vmem:[#allocation6 + $0x28] sm:$0xff]
    %v577 = vld [vmem:[#allocation6 + $0x30] sm:$0xff]
    %v578 = vld [vmem:[#allocation6 + $0x38] sm:$0xff]
    %v579 = vld [vmem:[#allocation6 + $0x40] sm:$0xff]
    %v580 = vld [vmem:[#allocation6 + $0x48] sm:$0xff]
    %v581 = vld [vmem:[#allocation6 + $0x50] sm:$0xff]
    %v582 = vld [vmem:[#allocation6 + $0x58] sm:$0xff]
    %v583 = vld [vmem:[#allocation6 + $0x60] sm:$0xff]
    %v584 = vld [vmem:[#allocation6 + $0x68] sm:$0xff]
    %v585 = vld [vmem:[#allocation6 + $0x70] sm:$0xff]
    %v586 = vld [vmem:[#allocation6 + $0x78] sm:$0xff]
    %587 = vmatprep.subr.mxu0 0.0
    %588 = vmatpush1.msra.mxu0 %v571
    %589 = vmatprep.subr.mxu0 0.0
    %590 = vmatpush1.msra.mxu0 %v572
    %591 = vmatprep.subr.mxu0 0.0
    %592 = vmatpush1.msra.mxu0 %v573
    %593 = vmatprep.subr.mxu0 0.0
    %594 = vmatpush1.msra.mxu0 %v574
    %595 = vmatprep.subr.mxu0 0.0
    %596 = vmatpush1.msra.mxu0 %v575
    %597 = vmatprep.subr.mxu0 0.0
    %598 = vmatpush1.msra.mxu0 %v576
    %599 = vmatprep.subr.mxu0 0.0
    %600 = vmatpush1.msra.mxu0 %v577
    %601 = vmatprep.subr.mxu0 0.0
    %602 = vmatpush1.msra.mxu0 %v578
    %603 = vmatprep.subr.mxu0 0.0
    %604 = vmatpush1.msra.mxu0 %v579
    %605 = vmatprep.subr.mxu0 0.0
    %606 = vmatpush1.msra.mxu0 %v580
    %607 = vmatprep.subr.mxu0 0.0
    %608 = vmatpush1.msra.mxu0 %v581
    %609 = vmatprep.subr.mxu0 0.0
    %610 = vmatpush1.msra.mxu0 %v582
    %611 = vmatprep.subr.mxu0 0.0
    %612 = vmatpush1.msra.mxu0 %v583
    %613 = vmatprep.subr.mxu0 0.0
    %614 = vmatpush1.msra.mxu0 %v584
    %615 = vmatprep.subr.mxu0 0.0
    %616 = vmatpush1.msra.mxu0 %v585
    %617 = vmatprep.subr.mxu0 0.0
    %618 = vmatpush1.msra.mxu0 %v586
    %619 = vmatprep.subr.mxu0 0.0
    %620 = vmatpush1.msra.mxu0 0.0
    %621 = vmatprep.subr.mxu0 0.0
    %622 = vmatpush1.msra.mxu0 0.0
    %623 = vmatprep.subr.mxu0 0.0
    %624 = vmatpush1.msra.mxu0 0.0
    %625 = vmatprep.subr.mxu0 0.0
    %626 = vmatpush1.msra.mxu0 0.0
    %627 = vmatprep.subr.mxu0 0.0
    %628 = vmatpush1.msra.mxu0 0.0
    %629 = vmatprep.subr.mxu0 0.0
    %630 = vmatpush1.msra.mxu0 0.0
    %631 = vmatprep.subr.mxu0 0.0
    %632 = vmatpush1.msra.mxu0 0.0
    %633 = vmatprep.subr.mxu0 0.0
    %634 = vmatpush1.msra.mxu0 0.0
    %635 = vmatprep.subr.mxu0 0.0
    %636 = vmatpush1.msra.mxu0 0.0
    %637 = vmatprep.subr.mxu0 0.0
    %638 = vmatpush1.msra.mxu0 0.0
    %639 = vmatprep.subr.mxu0 0.0
    %640 = vmatpush1.msra.mxu0 0.0
    %641 = vmatprep.subr.mxu0 0.0
    %642 = vmatpush1.msra.mxu0 0.0
    %643 = vmatprep.subr.mxu0 0.0
    %644 = vmatpush1.msra.mxu0 0.0
    %645 = vmatprep.subr.mxu0 0.0
    %646 = vmatpush1.msra.mxu0 0.0
    %647 = vmatprep.subr.mxu0 0.0
    %648 = vmatpush1.msra.mxu0 0.0
    %649 = vmatprep.subr.mxu0 0.0
    %650 = vmatpush1.msra.mxu0 0.0
    %651 = vmatprep.mubr.f32.mxu0 0.0
    %652 = vmatmul.mubr.f32.gmra.mrb[0].mxu0 %v566
    %v653 = vpop.f32.mrb[0].mxu0
    %v654 = vadd.f32 0.0, %v653
    %v655 = vpop.f32.mrb[0].mxu0
    %656 = vdwg.mxu0
    %v657 = vadd.f32 %v570, %v654
    %v658 = vtanh.pop %v657
    %v659 = vpack.c.bf16 %v658, %v658
    %s660 = scalar_lea.vmem %s4, 16
    %661 = vst [vmem:[%s660] sm:$0xf] %v659
    %v662 = vld [vmem:[#allocation3 + $0x28] sm:$0xff]
    %v663 = vld [vmem:[#allocation6] sm:$0xff]
    %v664 = vld [vmem:[#allocation6 + $0x8] sm:$0xff]
    %v665 = vld [vmem:[#allocation6 + $0x10] sm:$0xff]
    %v666 = vld [vmem:[#allocation6 + $0x18] sm:$0xff]
    %v667 = vld [vmem:[#allocation6 + $0x20] sm:$0xff]
    %v668 = vld [vmem:[#allocation6 + $0x28] sm:$0xff]
    %v669 = vld [vmem:[#allocation6 + $0x30] sm:$0xff]
    %v670 = vld [vmem:[#allocation6 + $0x38] sm:$0xff]
    %v671 = vld [vmem:[#allocation6 + $0x40] sm:$0xff]
    %v672 = vld [vmem:[#allocation6 + $0x48] sm:$0xff]
    %v673 = vld [vmem:[#allocation6 + $0x50] sm:$0xff]
    %v674 = vld [vmem:[#allocation6 + $0x58] sm:$0xff]
    %v675 = vld [vmem:[#allocation6 + $0x60] sm:$0xff]
    %v676 = vld [vmem:[#allocation6 + $0x68] sm:$0xff]
    %v677 = vld [vmem:[#allocation6 + $0x70] sm:$0xff]
    %v678 = vld [vmem:[#allocation6 + $0x78] sm:$0xff]
    %679 = vmatprep.subr.mxu0 0.0
    %680 = vmatpush1.msra.mxu0 %v663
    %681 = vmatprep.subr.mxu0 0.0
    %682 = vmatpush1.msra.mxu0 %v664
    %683 = vmatprep.subr.mxu0 0.0
    %684 = vmatpush1.msra.mxu0 %v665
    %685 = vmatprep.subr.mxu0 0.0
    %686 = vmatpush1.msra.mxu0 %v666
    %687 = vmatprep.subr.mxu0 0.0
    %688 = vmatpush1.msra.mxu0 %v667
    %689 = vmatprep.subr.mxu0 0.0
    %690 = vmatpush1.msra.mxu0 %v668
    %691 = vmatprep.subr.mxu0 0.0
    %692 = vmatpush1.msra.mxu0 %v669
    %693 = vmatprep.subr.mxu0 0.0
    %694 = vmatpush1.msra.mxu0 %v670
    %695 = vmatprep.subr.mxu0 0.0
    %696 = vmatpush1.msra.mxu0 %v671
    %697 = vmatprep.subr.mxu0 0.0
    %698 = vmatpush1.msra.mxu0 %v672
    %699 = vmatprep.subr.mxu0 0.0
    %700 = vmatpush1.msra.mxu0 %v673
    %701 = vmatprep.subr.mxu0 0.0
    %702 = vmatpush1.msra.mxu0 %v674
    %703 = vmatprep.subr.mxu0 0.0
    %704 = vmatpush1.msra.mxu0 %v675
    %705 = vmatprep.subr.mxu0 0.0
    %706 = vmatpush1.msra.mxu0 %v676
    %707 = vmatprep.subr.mxu0 0.0
    %708 = vmatpush1.msra.mxu0 %v677
    %709 = vmatprep.subr.mxu0 0.0
    %710 = vmatpush1.msra.mxu0 %v678
    %711 = vmatprep.subr.mxu0 0.0
    %712 = vmatpush1.msra.mxu0 0.0
    %713 = vmatprep.subr.mxu0 0.0
    %714 = vmatpush1.msra.mxu0 0.0
    %715 = vmatprep.subr.mxu0 0.0
    %716 = vmatpush1.msra.mxu0 0.0
    %717 = vmatprep.subr.mxu0 0.0
    %718 = vmatpush1.msra.mxu0 0.0
    %719 = vmatprep.subr.mxu0 0.0
    %720 = vmatpush1.msra.mxu0 0.0
    %721 = vmatprep.subr.mxu0 0.0
    %722 = vmatpush1.msra.mxu0 0.0
    %723 = vmatprep.subr.mxu0 0.0
    %724 = vmatpush1.msra.mxu0 0.0
    %725 = vmatprep.subr.mxu0 0.0
    %726 = vmatpush1.msra.mxu0 0.0
    %727 = vmatprep.subr.mxu0 0.0
    %728 = vmatpush1.msra.mxu0 0.0
    %729 = vmatprep.subr.mxu0 0.0
    %730 = vmatpush1.msra.mxu0 0.0
    %731 = vmatprep.subr.mxu0 0.0
    %732 = vmatpush1.msra.mxu0 0.0
    %733 = vmatprep.subr.mxu0 0.0
    %734 = vmatpush1.msra.mxu0 0.0
    %735 = vmatprep.subr.mxu0 0.0
    %736 = vmatpush1.msra.mxu0 0.0
    %737 = vmatprep.subr.mxu0 0.0
    %738 = vmatpush1.msra.mxu0 0.0
    %739 = vmatprep.subr.mxu0 0.0
    %740 = vmatpush1.msra.mxu0 0.0
    %741 = vmatprep.subr.mxu0 0.0
    %742 = vmatpush1.msra.mxu0 0.0
    %743 = vmatprep.mubr.f32.mxu0 0.0
    %744 = vmatmul.mubr.f32.gmra.mrb[0].mxu0 %v658
    %v745 = vpop.f32.mrb[0].mxu0
    %v746 = vadd.f32 0.0, %v745
    %v747 = vpop.f32.mrb[0].mxu0
    %748 = vdwg.mxu0
    %v749 = vadd.f32 %v662, %v746
    %v750 = vtanh.pop %v749
    %v751 = vpack.c.bf16 %v750, %v750
    %s752 = scalar_lea.vmem %s4, 20
    %753 = vst [vmem:[%s752] sm:$0xf] %v751
    %v754 = vld [vmem:[#allocation3 + $0x30] sm:$0xff]
    %v755 = vld [vmem:[#allocation6] sm:$0xff]
    %v756 = vld [vmem:[#allocation6 + $0x8] sm:$0xff]
    %v757 = vld [vmem:[#allocation6 + $0x10] sm:$0xff]
    %v758 = vld [vmem:[#allocation6 + $0x18] sm:$0xff]
    %v759 = vld [vmem:[#allocation6 + $0x20] sm:$0xff]
    %v760 = vld [vmem:[#allocation6 + $0x28] sm:$0xff]
    %v761 = vld [vmem:[#allocation6 + $0x30] sm:$0xff]
    %v762 = vld [vmem:[#allocation6 + $0x38] sm:$0xff]
    %v763 = vld [vmem:[#allocation6 + $0x40] sm:$0xff]
    %v764 = vld [vmem:[#allocation6 + $0x48] sm:$0xff]
    %v765 = vld [vmem:[#allocation6 + $0x50] sm:$0xff]
    %v766 = vld [vmem:[#allocation6 + $0x58] sm:$0xff]
    %v767 = vld [vmem:[#allocation6 + $0x60] sm:$0xff]
    %v768 = vld [vmem:[#allocation6 + $0x68] sm:$0xff]
    %v769 = vld [vmem:[#allocation6 + $0x70] sm:$0xff]
    %v770 = vld [vmem:[#allocation6 + $0x78] sm:$0xff]
    %771 = vmatprep.subr.mxu0 0.0
    %772 = vmatpush1.msra.mxu0 %v755
    %773 = vmatprep.subr.mxu0 0.0
    %774 = vmatpush1.msra.mxu0 %v756
    %775 = vmatprep.subr.mxu0 0.0
    %776 = vmatpush1.msra.mxu0 %v757
    %777 = vmatprep.subr.mxu0 0.0
    %778 = vmatpush1.msra.mxu0 %v758
    %779 = vmatprep.subr.mxu0 0.0
    %780 = vmatpush1.msra.mxu0 %v759
    %781 = vmatprep.subr.mxu0 0.0
    %782 = vmatpush1.msra.mxu0 %v760
    %783 = vmatprep.subr.mxu0 0.0
    %784 = vmatpush1.msra.mxu0 %v761
    %785 = vmatprep.subr.mxu0 0.0
    %786 = vmatpush1.msra.mxu0 %v762
    %787 = vmatprep.subr.mxu0 0.0
    %788 = vmatpush1.msra.mxu0 %v763
    %789 = vmatprep.subr.mxu0 0.0
    %790 = vmatpush1.msra.mxu0 %v764
    %791 = vmatprep.subr.mxu0 0.0
    %792 = vmatpush1.msra.mxu0 %v765
    %793 = vmatprep.subr.mxu0 0.0
    %794 = vmatpush1.msra.mxu0 %v766
    %795 = vmatprep.subr.mxu0 0.0
    %796 = vmatpush1.msra.mxu0 %v767
    %797 = vmatprep.subr.mxu0 0.0
    %798 = vmatpush1.msra.mxu0 %v768
    %799 = vmatprep.subr.mxu0 0.0
    %800 = vmatpush1.msra.mxu0 %v769
    %801 = vmatprep.subr.mxu0 0.0
    %802 = vmatpush1.msra.mxu0 %v770
    %803 = vmatprep.subr.mxu0 0.0
    %804 = vmatpush1.msra.mxu0 0.0
    %805 = vmatprep.subr.mxu0 0.0
    %806 = vmatpush1.msra.mxu0 0.0
    %807 = vmatprep.subr.mxu0 0.0
    %808 = vmatpush1.msra.mxu0 0.0
    %809 = vmatprep.subr.mxu0 0.0
    %810 = vmatpush1.msra.mxu0 0.0
    %811 = vmatprep.subr.mxu0 0.0
    %812 = vmatpush1.msra.mxu0 0.0
    %813 = vmatprep.subr.mxu0 0.0
    %814 = vmatpush1.msra.mxu0 0.0
    %815 = vmatprep.subr.mxu0 0.0
    %816 = vmatpush1.msra.mxu0 0.0
    %817 = vmatprep.subr.mxu0 0.0
    %818 = vmatpush1.msra.mxu0 0.0
    %819 = vmatprep.subr.mxu0 0.0
    %820 = vmatpush1.msra.mxu0 0.0
    %821 = vmatprep.subr.mxu0 0.0
    %822 = vmatpush1.msra.mxu0 0.0
    %823 = vmatprep.subr.mxu0 0.0
    %824 = vmatpush1.msra.mxu0 0.0
    %825 = vmatprep.subr.mxu0 0.0
    %826 = vmatpush1.msra.mxu0 0.0
    %827 = vmatprep.subr.mxu0 0.0
    %828 = vmatpush1.msra.mxu0 0.0
    %829 = vmatprep.subr.mxu0 0.0
    %830 = vmatpush1.msra.mxu0 0.0
    %831 = vmatprep.subr.mxu0 0.0
    %832 = vmatpush1.msra.mxu0 0.0
    %833 = vmatprep.subr.mxu0 0.0
    %834 = vmatpush1.msra.mxu0 0.0
    %835 = vmatprep.mubr.f32.mxu0 0.0
    %836 = vmatmul.mubr.f32.gmra.mrb[0].mxu0 %v750
    %v837 = vpop.f32.mrb[0].mxu0
    %v838 = vadd.f32 0.0, %v837
    %v839 = vpop.f32.mrb[0].mxu0
    %840 = vdwg.mxu0
    %v841 = vadd.f32 %v754, %v838
    %v842 = vtanh.pop %v841
    %v843 = vpack.c.bf16 %v842, %v842
    %s844 = scalar_lea.vmem %s4, 24
    %845 = vst [vmem:[%s844] sm:$0xf] %v843
    %v846 = vld [vmem:[#allocation3 + $0x38] sm:$0xff]
    %v847 = vld [vmem:[#allocation6] sm:$0xff]
    %v848 = vld [vmem:[#allocation6 + $0x8] sm:$0xff]
    %v849 = vld [vmem:[#allocation6 + $0x10] sm:$0xff]
    %v850 = vld [vmem:[#allocation6 + $0x18] sm:$0xff]
    %v851 = vld [vmem:[#allocation6 + $0x20] sm:$0xff]
    %v852 = vld [vmem:[#allocation6 + $0x28] sm:$0xff]
    %v853 = vld [vmem:[#allocation6 + $0x30] sm:$0xff]
    %v854 = vld [vmem:[#allocation6 + $0x38] sm:$0xff]
    %v855 = vld [vmem:[#allocation6 + $0x40] sm:$0xff]
    %v856 = vld [vmem:[#allocation6 + $0x48] sm:$0xff]
    %v857 = vld [vmem:[#allocation6 + $0x50] sm:$0xff]
    %v858 = vld [vmem:[#allocation6 + $0x58] sm:$0xff]
    %v859 = vld [vmem:[#allocation6 + $0x60] sm:$0xff]
    %v860 = vld [vmem:[#allocation6 + $0x68] sm:$0xff]
    %v861 = vld [vmem:[#allocation6 + $0x70] sm:$0xff]
    %v862 = vld [vmem:[#allocation6 + $0x78] sm:$0xff]
    %863 = vmatprep.subr.mxu0 0.0
    %864 = vmatpush1.msra.mxu0 %v847
    %865 = vmatprep.subr.mxu0 0.0
    %866 = vmatpush1.msra.mxu0 %v848
    %867 = vmatprep.subr.mxu0 0.0
    %868 = vmatpush1.msra.mxu0 %v849
    %869 = vmatprep.subr.mxu0 0.0
    %870 = vmatpush1.msra.mxu0 %v850
    %871 = vmatprep.subr.mxu0 0.0
    %872 = vmatpush1.msra.mxu0 %v851
    %873 = vmatprep.subr.mxu0 0.0
    %874 = vmatpush1.msra.mxu0 %v852
    %875 = vmatprep.subr.mxu0 0.0
    %876 = vmatpush1.msra.mxu0 %v853
    %877 = vmatprep.subr.mxu0 0.0
    %878 = vmatpush1.msra.mxu0 %v854
    %879 = vmatprep.subr.mxu0 0.0
    %880 = vmatpush1.msra.mxu0 %v855
    %881 = vmatprep.subr.mxu0 0.0
    %882 = vmatpush1.msra.mxu0 %v856
    %883 = vmatprep.subr.mxu0 0.0
    %884 = vmatpush1.msra.mxu0 %v857
    %885 = vmatprep.subr.mxu0 0.0
    %886 = vmatpush1.msra.mxu0 %v858
    %887 = vmatprep.subr.mxu0 0.0
    %888 = vmatpush1.msra.mxu0 %v859
    %889 = vmatprep.subr.mxu0 0.0
    %890 = vmatpush1.msra.mxu0 %v860
    %891 = vmatprep.subr.mxu0 0.0
    %892 = vmatpush1.msra.mxu0 %v861
    %893 = vmatprep.subr.mxu0 0.0
    %894 = vmatpush1.msra.mxu0 %v862
    %895 = vmatprep.subr.mxu0 0.0
    %896 = vmatpush1.msra.mxu0 0.0
    %897 = vmatprep.subr.mxu0 0.0
    %898 = vmatpush1.msra.mxu0 0.0
    %899 = vmatprep.subr.mxu0 0.0
    %900 = vmatpush1.msra.mxu0 0.0
    %901 = vmatprep.subr.mxu0 0.0
    %902 = vmatpush1.msra.mxu0 0.0
    %903 = vmatprep.subr.mxu0 0.0
    %904 = vmatpush1.msra.mxu0 0.0
    %905 = vmatprep.subr.mxu0 0.0
    %906 = vmatpush1.msra.mxu0 0.0
    %907 = vmatprep.subr.mxu0 0.0
    %908 = vmatpush1.msra.mxu0 0.0
    %909 = vmatprep.subr.mxu0 0.0
    %910 = vmatpush1.msra.mxu0 0.0
    %911 = vmatprep.subr.mxu0 0.0
    %912 = vmatpush1.msra.mxu0 0.0
    %913 = vmatprep.subr.mxu0 0.0
    %914 = vmatpush1.msra.mxu0 0.0
    %915 = vmatprep.subr.mxu0 0.0
    %916 = vmatpush1.msra.mxu0 0.0
    %917 = vmatprep.subr.mxu0 0.0
    %918 = vmatpush1.msra.mxu0 0.0
    %919 = vmatprep.subr.mxu0 0.0
    %920 = vmatpush1.msra.mxu0 0.0
    %921 = vmatprep.subr.mxu0 0.0
    %922 = vmatpush1.msra.mxu0 0.0
    %923 = vmatprep.subr.mxu0 0.0
    %924 = vmatpush1.msra.mxu0 0.0
    %925 = vmatprep.subr.mxu0 0.0
    %926 = vmatpush1.msra.mxu0 0.0
    %927 = vmatprep.mubr.f32.mxu0 0.0
    %928 = vmatmul.mubr.f32.gmra.mrb[0].mxu0 %v842
    %v929 = vpop.f32.mrb[0].mxu0
    %v930 = vadd.f32 0.0, %v929
    %v931 = vpop.f32.mrb[0].mxu0
    %932 = vdwg.mxu0
    %v933 = vadd.f32 %v846, %v930
    %v934 = vtanh.pop %v933
    %v935 = vpack.c.bf16 %v934, %v934
    %s936 = scalar_lea.vmem %s4, 28
    %937 = vst [vmem:[%s936] sm:$0xf] %v935
    %938 = vst [vmem:[#allocation2] sm:$0xff] %v934
    // Predicated region
    $region30: #{rnn_model_forward.2} parent=1 // pred_check
      _
    $region31: #{rnn_model_forward.2} parent=1 // pred_check_branch
      %940 = sbr.rel (0) target = $region33
    $region32: #{rnn_model_forward.2} parent=1 // pred_region
      _
    $region33: #{rnn_model_forward.2} parent=1 // pred_fallthru
      _
    // Predicated region
    $region34: #{rnn_model_forward.2} parent=1 // pred_check
      _
    $region35: #{rnn_model_forward.2} parent=1 // pred_check_branch
      %942 = sbr.rel (0) target = $region37
    $region36: #{rnn_model_forward.2} parent=1 // pred_region
      _
    $region37: #{rnn_model_forward.2} parent=1 // pred_fallthru
      _
    %943 = vsyncpa [#allocation5], 1
    %944 = vsyncpa [#allocation7], 1

// kernel: rnn_model_forward.3
$region0: #{rnn_model_forward.3}
  #allocation0 [shape = 'u32[]', space=smem, size = 0x4, offset = 0x4, fixed_abs, tag = 'smem constant byte address 0x4 - core index']
  #allocation1 [shape = 'u32[144,128]{1,0:T(1,128)}', space=vmem, size = 0x12000, scoped, tag = 'internal scratch']
  #allocation2 [shape = 'f32[8,128]{1,0:T(8,128)}', space=vmem, size = 0x1000, scoped, tag = 'scratch operand']
  #allocation3 [shape = 'f32[64,128]{1,0:T(8,128)}', space=vmem, size = 0x8000, scoped, tag = 'scratch operand']
  %s0 = inlined_call_operand.vmem [shape: bf16[8,8,128], index: 0, kind: input, shape index: {}]
  %s1 = inlined_call_operand.vmem [shape: f32[128,128], index: 1, kind: input, shape index: {}]
  %s2 = inlined_call_operand.vmem [shape: f32[1,128], index: 2, kind: input, shape index: {}]
  %s3 = inlined_call_operand.vmem [shape: f32[128,128], index: 3, kind: input, shape index: {}]
  %s4 = inlined_call_operand.vmem [shape: f32[128,128], index: 4, kind: input, shape index: {}]
  %s5 = inlined_call_operand.vmem [shape: f32[1,128], index: 5, kind: input, shape index: {}]
  %s6 = inlined_call_operand.vmem [shape: f32[8,128], index: 6, kind: output, shape index: {}]
  %s7 = sld [smem:[#allocation0]]
  $region42: #{rnn_model_forward.3} parent=0
    _
  %s9 = ssub.s32 1, %s7
  %s10 = scalar_select 0, %s9, %s7
  // Predicated region
  $region2: #{rnn_model_forward.3} parent=0 // pred_check
    _
  $region3: #{rnn_model_forward.3} parent=0 // pred_check_branch
    %12 = sbr.rel (0) target = $region5
  $region4: #{rnn_model_forward.3} parent=0 // pred_region
    _
  $region5: #{rnn_model_forward.3} parent=0 // pred_fallthru
    _
  // Predicated region
  $region6: #{rnn_model_forward.3} parent=0 // pred_check
    _
  $region7: #{rnn_model_forward.3} parent=0 // pred_check_branch
    %14 = sbr.rel (0) target = $region9
  $region8: #{rnn_model_forward.3} parent=0 // pred_region
    _
  $region9: #{rnn_model_forward.3} parent=0 // pred_fallthru
    _
  // Predicated region
  $region10: #{rnn_model_forward.3} parent=0 // pred_check
    _
  $region11: #{rnn_model_forward.3} parent=0 // pred_check_branch
    %16 = sbr.rel (0) target = $region13
  $region12: #{rnn_model_forward.3} parent=0 // pred_region
    _
  $region13: #{rnn_model_forward.3} parent=0 // pred_fallthru
    _
  // Predicated region
  $region14: #{rnn_model_forward.3} parent=0 // pred_check
    _
  $region15: #{rnn_model_forward.3} parent=0 // pred_check_branch
    %18 = sbr.rel (0) target = $region17
  $region16: #{rnn_model_forward.3} parent=0 // pred_region
    _
  $region17: #{rnn_model_forward.3} parent=0 // pred_fallthru
    _
  // Predicated region
  $region18: #{rnn_model_forward.3} parent=0 // pred_check
    _
  $region19: #{rnn_model_forward.3} parent=0 // pred_check_branch
    %20 = sbr.rel (0) target = $region21
  $region20: #{rnn_model_forward.3} parent=0 // pred_region
    _
  $region21: #{rnn_model_forward.3} parent=0 // pred_fallthru
    _
  // Predicated region
  $region22: #{rnn_model_forward.3} parent=0 // pred_check
    _
  $region23: #{rnn_model_forward.3} parent=0 // pred_check_branch
    %22 = sbr.rel (0) target = $region25
  $region24: #{rnn_model_forward.3} parent=0 // pred_region
    _
  $region25: #{rnn_model_forward.3} parent=0 // pred_fallthru
    _
  %p23 = scmp.eq.s32.totalorder 0, 0
  // Predicated region
  $region26: #{rnn_model_forward.3} parent=0 // pred_check
    %p24 = pneg %p23
  $region27: #{rnn_model_forward.3} parent=0 // pred_check_branch
    %26 = sbr.rel (%p24) target = $region29
  $region28: #{rnn_model_forward.3} parent=0 // pred_region
    %27 = vst [vmem:[#allocation2] sm:$0xff] 0.0
  $region29: #{rnn_model_forward.3} parent=0 // pred_fallthru
    _
  %v28 = vld [vmem:[%s0] sm:$0xf]
  %v29 = vld [vmem:[%s0 + $0x4] sm:$0xf]
  %v30 = vld [vmem:[%s0 + $0x8] sm:$0xf]
  %v31 = vld [vmem:[%s0 + $0xc] sm:$0xf]
  %v32 = vld [vmem:[%s0 + $0x10] sm:$0xf]
  %v33 = vld [vmem:[%s0 + $0x14] sm:$0xf]
  %v34 = vld [vmem:[%s0 + $0x18] sm:$0xf]
  %v35 = vld [vmem:[%s0 + $0x1c] sm:$0xf]
  %v36 = vunpack.c.l.bf16 %v28
  %v37 = vunpack.c.l.bf16 %v29
  %v38 = vunpack.c.l.bf16 %v30
  %v39 = vunpack.c.l.bf16 %v31
  %v40 = vunpack.c.l.bf16 %v32
  %v41 = vunpack.c.l.bf16 %v33
  %v42 = vunpack.c.l.bf16 %v34
  %v43 = vunpack.c.l.bf16 %v35
  %v44 = vld [vmem:[%s1] sm:$0xff]
  %v45 = vld [vmem:[%s1 + $0x8] sm:$0xff]
  %v46 = vld [vmem:[%s1 + $0x10] sm:$0xff]
  %v47 = vld [vmem:[%s1 + $0x18] sm:$0xff]
  %v48 = vld [vmem:[%s1 + $0x20] sm:$0xff]
  %v49 = vld [vmem:[%s1 + $0x28] sm:$0xff]
  %v50 = vld [vmem:[%s1 + $0x30] sm:$0xff]
  %v51 = vld [vmem:[%s1 + $0x38] sm:$0xff]
  %v52 = vld [vmem:[%s1 + $0x40] sm:$0xff]
  %v53 = vld [vmem:[%s1 + $0x48] sm:$0xff]
  %v54 = vld [vmem:[%s1 + $0x50] sm:$0xff]
  %v55 = vld [vmem:[%s1 + $0x58] sm:$0xff]
  %v56 = vld [vmem:[%s1 + $0x60] sm:$0xff]
  %v57 = vld [vmem:[%s1 + $0x68] sm:$0xff]
  %v58 = vld [vmem:[%s1 + $0x70] sm:$0xff]
  %v59 = vld [vmem:[%s1 + $0x78] sm:$0xff]
  %v60 = vld [vmem:[%s2] sm:$0x1]
  %v62 = vlaneseq
  %v63 = vshrl.u32 %v62, 7
  %v64 = vsub.s32 0, %v63
  %v65 = vrot.slane %v60, %v64
  %67 = vmatprep.subr.mxu0 0.0
  %68 = vmatpush1.msra.mxu0 %v44
  %69 = vmatprep.subr.mxu0 0.0
  %70 = vmatpush1.msra.mxu0 %v45
  %71 = vmatprep.subr.mxu0 0.0
  %72 = vmatpush1.msra.mxu0 %v46
  %73 = vmatprep.subr.mxu0 0.0
  %74 = vmatpush1.msra.mxu0 %v47
  %75 = vmatprep.subr.mxu0 0.0
  %76 = vmatpush1.msra.mxu0 %v48
  %77 = vmatprep.subr.mxu0 0.0
  %78 = vmatpush1.msra.mxu0 %v49
  %79 = vmatprep.subr.mxu0 0.0
  %80 = vmatpush1.msra.mxu0 %v50
  %81 = vmatprep.subr.mxu0 0.0
  %82 = vmatpush1.msra.mxu0 %v51
  %83 = vmatprep.subr.mxu0 0.0
  %84 = vmatpush1.msra.mxu0 %v52
  %85 = vmatprep.subr.mxu0 0.0
  %86 = vmatpush1.msra.mxu0 %v53
  %87 = vmatprep.subr.mxu0 0.0
  %88 = vmatpush1.msra.mxu0 %v54
  %89 = vmatprep.subr.mxu0 0.0
  %90 = vmatpush1.msra.mxu0 %v55
  %91 = vmatprep.subr.mxu0 0.0
  %92 = vmatpush1.msra.mxu0 %v56
  %93 = vmatprep.subr.mxu0 0.0
  %94 = vmatpush1.msra.mxu0 %v57
  %95 = vmatprep.subr.mxu0 0.0
  %96 = vmatpush1.msra.mxu0 %v58
  %97 = vmatprep.subr.mxu0 0.0
  %98 = vmatpush1.msra.mxu0 %v59
  %99 = vmatprep.subr.mxu0 0.0
  %100 = vmatpush1.msra.mxu0 0.0
  %101 = vmatprep.subr.mxu0 0.0
  %102 = vmatpush1.msra.mxu0 0.0
  %103 = vmatprep.subr.mxu0 0.0
  %104 = vmatpush1.msra.mxu0 0.0
  %105 = vmatprep.subr.mxu0 0.0
  %106 = vmatpush1.msra.mxu0 0.0
  %107 = vmatprep.subr.mxu0 0.0
  %108 = vmatpush1.msra.mxu0 0.0
  %109 = vmatprep.subr.mxu0 0.0
  %110 = vmatpush1.msra.mxu0 0.0
  %111 = vmatprep.subr.mxu0 0.0
  %112 = vmatpush1.msra.mxu0 0.0
  %113 = vmatprep.subr.mxu0 0.0
  %114 = vmatpush1.msra.mxu0 0.0
  %115 = vmatprep.subr.mxu0 0.0
  %116 = vmatpush1.msra.mxu0 0.0
  %117 = vmatprep.subr.mxu0 0.0
  %118 = vmatpush1.msra.mxu0 0.0
  %119 = vmatprep.subr.mxu0 0.0
  %120 = vmatpush1.msra.mxu0 0.0
  %121 = vmatprep.subr.mxu0 0.0
  %122 = vmatpush1.msra.mxu0 0.0
  %123 = vmatprep.subr.mxu0 0.0
  %124 = vmatpush1.msra.mxu0 0.0
  %125 = vmatprep.subr.mxu0 0.0
  %126 = vmatpush1.msra.mxu0 0.0
  %127 = vmatprep.subr.mxu0 0.0
  %128 = vmatpush1.msra.mxu0 0.0
  %129 = vmatprep.subr.mxu0 0.0
  %130 = vmatpush1.msra.mxu0 0.0
  %131 = vmatprep.mubr.f32.mxu0 0.0
  %132 = vmatmul.mubr.f32.gmra.mrb[0].mxu0 %v36
  %v133 = vpop.f32.mrb[0].mxu0
  %v134 = vadd.f32 %v65, %v133
  %v135 = vpop.f32.mrb[0].mxu0
  %136 = vmatprep.mubr.f32.mxu0 0.0
  %137 = vmatmul.mubr.f32.gmra.mrb[0].mxu0 %v37
  %v138 = vpop.f32.mrb[0].mxu0
  %v139 = vadd.f32 %v65, %v138
  %v140 = vpop.f32.mrb[0].mxu0
  %141 = vmatprep.mubr.f32.mxu0 0.0
  %142 = vmatmul.mubr.f32.gmra.mrb[0].mxu0 %v38
  %v143 = vpop.f32.mrb[0].mxu0
  %v144 = vadd.f32 %v65, %v143
  %v145 = vpop.f32.mrb[0].mxu0
  %146 = vmatprep.mubr.f32.mxu0 0.0
  %147 = vmatmul.mubr.f32.gmra.mrb[0].mxu0 %v39
  %v148 = vpop.f32.mrb[0].mxu0
  %v149 = vadd.f32 %v65, %v148
  %v150 = vpop.f32.mrb[0].mxu0
  %151 = vmatprep.mubr.f32.mxu0 0.0
  %152 = vmatmul.mubr.f32.gmra.mrb[0].mxu0 %v40
  %v153 = vpop.f32.mrb[0].mxu0
  %v154 = vadd.f32 %v65, %v153
  %v155 = vpop.f32.mrb[0].mxu0
  %156 = vmatprep.mubr.f32.mxu0 0.0
  %157 = vmatmul.mubr.f32.gmra.mrb[0].mxu0 %v41
  %v158 = vpop.f32.mrb[0].mxu0
  %v159 = vadd.f32 %v65, %v158
  %v160 = vpop.f32.mrb[0].mxu0
  %161 = vmatprep.mubr.f32.mxu0 0.0
  %162 = vmatmul.mubr.f32.gmra.mrb[0].mxu0 %v42
  %v163 = vpop.f32.mrb[0].mxu0
  %v164 = vadd.f32 %v65, %v163
  %v165 = vpop.f32.mrb[0].mxu0
  %166 = vmatprep.mubr.f32.mxu0 0.0
  %167 = vmatmul.mubr.f32.gmra.mrb[0].mxu0 %v43
  %v168 = vpop.f32.mrb[0].mxu0
  %v169 = vadd.f32 %v65, %v168
  %v170 = vpop.f32.mrb[0].mxu0
  %171 = vdwg.mxu0
  %172 = vst [vmem:[#allocation3] sm:$0xff] %v134
  %173 = vst [vmem:[#allocation3 + $0x8] sm:$0xff] %v139
  %174 = vst [vmem:[#allocation3 + $0x10] sm:$0xff] %v144
  %175 = vst [vmem:[#allocation3 + $0x18] sm:$0xff] %v149
  %176 = vst [vmem:[#allocation3 + $0x20] sm:$0xff] %v154
  %177 = vst [vmem:[#allocation3 + $0x28] sm:$0xff] %v159
  %178 = vst [vmem:[#allocation3 + $0x30] sm:$0xff] %v164
  %179 = vst [vmem:[#allocation3 + $0x38] sm:$0xff] %v169
  %v180 = vld [vmem:[#allocation2] sm:$0xff]
  %v181 = vld [vmem:[#allocation3] sm:$0xff]
  %v182 = vld [vmem:[%s3] sm:$0xff]
  %v183 = vld [vmem:[%s3 + $0x8] sm:$0xff]
  %v184 = vld [vmem:[%s3 + $0x10] sm:$0xff]
  %v185 = vld [vmem:[%s3 + $0x18] sm:$0xff]
  %v186 = vld [vmem:[%s3 + $0x20] sm:$0xff]
  %v187 = vld [vmem:[%s3 + $0x28] sm:$0xff]
  %v188 = vld [vmem:[%s3 + $0x30] sm:$0xff]
  %v189 = vld [vmem:[%s3 + $0x38] sm:$0xff]
  %v190 = vld [vmem:[%s3 + $0x40] sm:$0xff]
  %v191 = vld [vmem:[%s3 + $0x48] sm:$0xff]
  %v192 = vld [vmem:[%s3 + $0x50] sm:$0xff]
  %v193 = vld [vmem:[%s3 + $0x58] sm:$0xff]
  %v194 = vld [vmem:[%s3 + $0x60] sm:$0xff]
  %v195 = vld [vmem:[%s3 + $0x68] sm:$0xff]
  %v196 = vld [vmem:[%s3 + $0x70] sm:$0xff]
  %v197 = vld [vmem:[%s3 + $0x78] sm:$0xff]
  %198 = vmatprep.subr.mxu0 0.0
  %199 = vmatpush1.msra.mxu0 %v182
  %200 = vmatprep.subr.mxu0 0.0
  %201 = vmatpush1.msra.mxu0 %v183
  %202 = vmatprep.subr.mxu0 0.0
  %203 = vmatpush1.msra.mxu0 %v184
  %204 = vmatprep.subr.mxu0 0.0
  %205 = vmatpush1.msra.mxu0 %v185
  %206 = vmatprep.subr.mxu0 0.0
  %207 = vmatpush1.msra.mxu0 %v186
  %208 = vmatprep.subr.mxu0 0.0
  %209 = vmatpush1.msra.mxu0 %v187
  %210 = vmatprep.subr.mxu0 0.0
  %211 = vmatpush1.msra.mxu0 %v188
  %212 = vmatprep.subr.mxu0 0.0
  %213 = vmatpush1.msra.mxu0 %v189
  %214 = vmatprep.subr.mxu0 0.0
  %215 = vmatpush1.msra.mxu0 %v190
  %216 = vmatprep.subr.mxu0 0.0
  %217 = vmatpush1.msra.mxu0 %v191
  %218 = vmatprep.subr.mxu0 0.0
  %219 = vmatpush1.msra.mxu0 %v192
  %220 = vmatprep.subr.mxu0 0.0
  %221 = vmatpush1.msra.mxu0 %v193
  %222 = vmatprep.subr.mxu0 0.0
  %223 = vmatpush1.msra.mxu0 %v194
  %224 = vmatprep.subr.mxu0 0.0
  %225 = vmatpush1.msra.mxu0 %v195
  %226 = vmatprep.subr.mxu0 0.0
  %227 = vmatpush1.msra.mxu0 %v196
  %228 = vmatprep.subr.mxu0 0.0
  %229 = vmatpush1.msra.mxu0 %v197
  %230 = vmatprep.subr.mxu0 0.0
  %231 = vmatpush1.msra.mxu0 0.0
  %232 = vmatprep.subr.mxu0 0.0
  %233 = vmatpush1.msra.mxu0 0.0
  %234 = vmatprep.subr.mxu0 0.0
  %235 = vmatpush1.msra.mxu0 0.0
  %236 = vmatprep.subr.mxu0 0.0
  %237 = vmatpush1.msra.mxu0 0.0
  %238 = vmatprep.subr.mxu0 0.0
  %239 = vmatpush1.msra.mxu0 0.0
  %240 = vmatprep.subr.mxu0 0.0
  %241 = vmatpush1.msra.mxu0 0.0
  %242 = vmatprep.subr.mxu0 0.0
  %243 = vmatpush1.msra.mxu0 0.0
  %244 = vmatprep.subr.mxu0 0.0
  %245 = vmatpush1.msra.mxu0 0.0
  %246 = vmatprep.subr.mxu0 0.0
  %247 = vmatpush1.msra.mxu0 0.0
  %248 = vmatprep.subr.mxu0 0.0
  %249 = vmatpush1.msra.mxu0 0.0
  %250 = vmatprep.subr.mxu0 0.0
  %251 = vmatpush1.msra.mxu0 0.0
  %252 = vmatprep.subr.mxu0 0.0
  %253 = vmatpush1.msra.mxu0 0.0
  %254 = vmatprep.subr.mxu0 0.0
  %255 = vmatpush1.msra.mxu0 0.0
  %256 = vmatprep.subr.mxu0 0.0
  %257 = vmatpush1.msra.mxu0 0.0
  %258 = vmatprep.subr.mxu0 0.0
  %259 = vmatpush1.msra.mxu0 0.0
  %260 = vmatprep.subr.mxu0 0.0
  %261 = vmatpush1.msra.mxu0 0.0
  %262 = vmatprep.mubr.f32.mxu0 0.0
  %263 = vmatmul.mubr.f32.gmra.mrb[0].mxu0 %v180
  %v264 = vpop.f32.mrb[0].mxu0
  %v265 = vadd.f32 0.0, %v264
  %v266 = vpop.f32.mrb[0].mxu0
  %267 = vdwg.mxu0
  %v268 = vadd.f32 %v181, %v265
  %v269 = vtanh.pop %v268
  %v270 = vld [vmem:[#allocation3 + $0x8] sm:$0xff]
  %271 = vmatprep.subr.mxu0 0.0
  %272 = vmatpush1.msra.mxu0 %v182
  %273 = vmatprep.subr.mxu0 0.0
  %274 = vmatpush1.msra.mxu0 %v183
  %275 = vmatprep.subr.mxu0 0.0
  %276 = vmatpush1.msra.mxu0 %v184
  %277 = vmatprep.subr.mxu0 0.0
  %278 = vmatpush1.msra.mxu0 %v185
  %279 = vmatprep.subr.mxu0 0.0
  %280 = vmatpush1.msra.mxu0 %v186
  %281 = vmatprep.subr.mxu0 0.0
  %282 = vmatpush1.msra.mxu0 %v187
  %283 = vmatprep.subr.mxu0 0.0
  %284 = vmatpush1.msra.mxu0 %v188
  %285 = vmatprep.subr.mxu0 0.0
  %286 = vmatpush1.msra.mxu0 %v189
  %287 = vmatprep.subr.mxu0 0.0
  %288 = vmatpush1.msra.mxu0 %v190
  %289 = vmatprep.subr.mxu0 0.0
  %290 = vmatpush1.msra.mxu0 %v191
  %291 = vmatprep.subr.mxu0 0.0
  %292 = vmatpush1.msra.mxu0 %v192
  %293 = vmatprep.subr.mxu0 0.0
  %294 = vmatpush1.msra.mxu0 %v193
  %295 = vmatprep.subr.mxu0 0.0
  %296 = vmatpush1.msra.mxu0 %v194
  %297 = vmatprep.subr.mxu0 0.0
  %298 = vmatpush1.msra.mxu0 %v195
  %299 = vmatprep.subr.mxu0 0.0
  %300 = vmatpush1.msra.mxu0 %v196
  %301 = vmatprep.subr.mxu0 0.0
  %302 = vmatpush1.msra.mxu0 %v197
  %303 = vmatprep.subr.mxu0 0.0
  %304 = vmatpush1.msra.mxu0 0.0
  %305 = vmatprep.subr.mxu0 0.0
  %306 = vmatpush1.msra.mxu0 0.0
  %307 = vmatprep.subr.mxu0 0.0
  %308 = vmatpush1.msra.mxu0 0.0
  %309 = vmatprep.subr.mxu0 0.0
  %310 = vmatpush1.msra.mxu0 0.0
  %311 = vmatprep.subr.mxu0 0.0
  %312 = vmatpush1.msra.mxu0 0.0
  %313 = vmatprep.subr.mxu0 0.0
  %314 = vmatpush1.msra.mxu0 0.0
  %315 = vmatprep.subr.mxu0 0.0
  %316 = vmatpush1.msra.mxu0 0.0
  %317 = vmatprep.subr.mxu0 0.0
  %318 = vmatpush1.msra.mxu0 0.0
  %319 = vmatprep.subr.mxu0 0.0
  %320 = vmatpush1.msra.mxu0 0.0
  %321 = vmatprep.subr.mxu0 0.0
  %322 = vmatpush1.msra.mxu0 0.0
  %323 = vmatprep.subr.mxu0 0.0
  %324 = vmatpush1.msra.mxu0 0.0
  %325 = vmatprep.subr.mxu0 0.0
  %326 = vmatpush1.msra.mxu0 0.0
  %327 = vmatprep.subr.mxu0 0.0
  %328 = vmatpush1.msra.mxu0 0.0
  %329 = vmatprep.subr.mxu0 0.0
  %330 = vmatpush1.msra.mxu0 0.0
  %331 = vmatprep.subr.mxu0 0.0
  %332 = vmatpush1.msra.mxu0 0.0
  %333 = vmatprep.subr.mxu0 0.0
  %334 = vmatpush1.msra.mxu0 0.0
  %335 = vmatprep.mubr.f32.mxu0 0.0
  %336 = vmatmul.mubr.f32.gmra.mrb[0].mxu0 %v269
  %v337 = vpop.f32.mrb[0].mxu0
  %v338 = vadd.f32 0.0, %v337
  %v339 = vpop.f32.mrb[0].mxu0
  %340 = vdwg.mxu0
  %v341 = vadd.f32 %v270, %v338
  %v342 = vtanh.pop %v341
  %v343 = vld [vmem:[#allocation3 + $0x10] sm:$0xff]
  %344 = vmatprep.subr.mxu0 0.0
  %345 = vmatpush1.msra.mxu0 %v182
  %346 = vmatprep.subr.mxu0 0.0
  %347 = vmatpush1.msra.mxu0 %v183
  %348 = vmatprep.subr.mxu0 0.0
  %349 = vmatpush1.msra.mxu0 %v184
  %350 = vmatprep.subr.mxu0 0.0
  %351 = vmatpush1.msra.mxu0 %v185
  %352 = vmatprep.subr.mxu0 0.0
  %353 = vmatpush1.msra.mxu0 %v186
  %354 = vmatprep.subr.mxu0 0.0
  %355 = vmatpush1.msra.mxu0 %v187
  %356 = vmatprep.subr.mxu0 0.0
  %357 = vmatpush1.msra.mxu0 %v188
  %358 = vmatprep.subr.mxu0 0.0
  %359 = vmatpush1.msra.mxu0 %v189
  %360 = vmatprep.subr.mxu0 0.0
  %361 = vmatpush1.msra.mxu0 %v190
  %362 = vmatprep.subr.mxu0 0.0
  %363 = vmatpush1.msra.mxu0 %v191
  %364 = vmatprep.subr.mxu0 0.0
  %365 = vmatpush1.msra.mxu0 %v192
  %366 = vmatprep.subr.mxu0 0.0
  %367 = vmatpush1.msra.mxu0 %v193
  %368 = vmatprep.subr.mxu0 0.0
  %369 = vmatpush1.msra.mxu0 %v194
  %370 = vmatprep.subr.mxu0 0.0
  %371 = vmatpush1.msra.mxu0 %v195
  %372 = vmatprep.subr.mxu0 0.0
  %373 = vmatpush1.msra.mxu0 %v196
  %374 = vmatprep.subr.mxu0 0.0
  %375 = vmatpush1.msra.mxu0 %v197
  %376 = vmatprep.subr.mxu0 0.0
  %377 = vmatpush1.msra.mxu0 0.0
  %378 = vmatprep.subr.mxu0 0.0
  %379 = vmatpush1.msra.mxu0 0.0
  %380 = vmatprep.subr.mxu0 0.0
  %381 = vmatpush1.msra.mxu0 0.0
  %382 = vmatprep.subr.mxu0 0.0
  %383 = vmatpush1.msra.mxu0 0.0
  %384 = vmatprep.subr.mxu0 0.0
  %385 = vmatpush1.msra.mxu0 0.0
  %386 = vmatprep.subr.mxu0 0.0
  %387 = vmatpush1.msra.mxu0 0.0
  %388 = vmatprep.subr.mxu0 0.0
  %389 = vmatpush1.msra.mxu0 0.0
  %390 = vmatprep.subr.mxu0 0.0
  %391 = vmatpush1.msra.mxu0 0.0
  %392 = vmatprep.subr.mxu0 0.0
  %393 = vmatpush1.msra.mxu0 0.0
  %394 = vmatprep.subr.mxu0 0.0
  %395 = vmatpush1.msra.mxu0 0.0
  %396 = vmatprep.subr.mxu0 0.0
  %397 = vmatpush1.msra.mxu0 0.0
  %398 = vmatprep.subr.mxu0 0.0
  %399 = vmatpush1.msra.mxu0 0.0
  %400 = vmatprep.subr.mxu0 0.0
  %401 = vmatpush1.msra.mxu0 0.0
  %402 = vmatprep.subr.mxu0 0.0
  %403 = vmatpush1.msra.mxu0 0.0
  %404 = vmatprep.subr.mxu0 0.0
  %405 = vmatpush1.msra.mxu0 0.0
  %406 = vmatprep.subr.mxu0 0.0
  %407 = vmatpush1.msra.mxu0 0.0
  %408 = vmatprep.mubr.f32.mxu0 0.0
  %409 = vmatmul.mubr.f32.gmra.mrb[0].mxu0 %v342
  %v410 = vpop.f32.mrb[0].mxu0
  %v411 = vadd.f32 0.0, %v410
  %v412 = vpop.f32.mrb[0].mxu0
  %413 = vdwg.mxu0
  %v414 = vadd.f32 %v343, %v411
  %v415 = vtanh.pop %v414
  %v416 = vld [vmem:[#allocation3 + $0x18] sm:$0xff]
  %417 = vmatprep.subr.mxu0 0.0
  %418 = vmatpush1.msra.mxu0 %v182
  %419 = vmatprep.subr.mxu0 0.0
  %420 = vmatpush1.msra.mxu0 %v183
  %421 = vmatprep.subr.mxu0 0.0
  %422 = vmatpush1.msra.mxu0 %v184
  %423 = vmatprep.subr.mxu0 0.0
  %424 = vmatpush1.msra.mxu0 %v185
  %425 = vmatprep.subr.mxu0 0.0
  %426 = vmatpush1.msra.mxu0 %v186
  %427 = vmatprep.subr.mxu0 0.0
  %428 = vmatpush1.msra.mxu0 %v187
  %429 = vmatprep.subr.mxu0 0.0
  %430 = vmatpush1.msra.mxu0 %v188
  %431 = vmatprep.subr.mxu0 0.0
  %432 = vmatpush1.msra.mxu0 %v189
  %433 = vmatprep.subr.mxu0 0.0
  %434 = vmatpush1.msra.mxu0 %v190
  %435 = vmatprep.subr.mxu0 0.0
  %436 = vmatpush1.msra.mxu0 %v191
  %437 = vmatprep.subr.mxu0 0.0
  %438 = vmatpush1.msra.mxu0 %v192
  %439 = vmatprep.subr.mxu0 0.0
  %440 = vmatpush1.msra.mxu0 %v193
  %441 = vmatprep.subr.mxu0 0.0
  %442 = vmatpush1.msra.mxu0 %v194
  %443 = vmatprep.subr.mxu0 0.0
  %444 = vmatpush1.msra.mxu0 %v195
  %445 = vmatprep.subr.mxu0 0.0
  %446 = vmatpush1.msra.mxu0 %v196
  %447 = vmatprep.subr.mxu0 0.0
  %448 = vmatpush1.msra.mxu0 %v197
  %449 = vmatprep.subr.mxu0 0.0
  %450 = vmatpush1.msra.mxu0 0.0
  %451 = vmatprep.subr.mxu0 0.0
  %452 = vmatpush1.msra.mxu0 0.0
  %453 = vmatprep.subr.mxu0 0.0
  %454 = vmatpush1.msra.mxu0 0.0
  %455 = vmatprep.subr.mxu0 0.0
  %456 = vmatpush1.msra.mxu0 0.0
  %457 = vmatprep.subr.mxu0 0.0
  %458 = vmatpush1.msra.mxu0 0.0
  %459 = vmatprep.subr.mxu0 0.0
  %460 = vmatpush1.msra.mxu0 0.0
  %461 = vmatprep.subr.mxu0 0.0
  %462 = vmatpush1.msra.mxu0 0.0
  %463 = vmatprep.subr.mxu0 0.0
  %464 = vmatpush1.msra.mxu0 0.0
  %465 = vmatprep.subr.mxu0 0.0
  %466 = vmatpush1.msra.mxu0 0.0
  %467 = vmatprep.subr.mxu0 0.0
  %468 = vmatpush1.msra.mxu0 0.0
  %469 = vmatprep.subr.mxu0 0.0
  %470 = vmatpush1.msra.mxu0 0.0
  %471 = vmatprep.subr.mxu0 0.0
  %472 = vmatpush1.msra.mxu0 0.0
  %473 = vmatprep.subr.mxu0 0.0
  %474 = vmatpush1.msra.mxu0 0.0
  %475 = vmatprep.subr.mxu0 0.0
  %476 = vmatpush1.msra.mxu0 0.0
  %477 = vmatprep.subr.mxu0 0.0
  %478 = vmatpush1.msra.mxu0 0.0
  %479 = vmatprep.subr.mxu0 0.0
  %480 = vmatpush1.msra.mxu0 0.0
  %481 = vmatprep.mubr.f32.mxu0 0.0
  %482 = vmatmul.mubr.f32.gmra.mrb[0].mxu0 %v415
  %v483 = vpop.f32.mrb[0].mxu0
  %v484 = vadd.f32 0.0, %v483
  %v485 = vpop.f32.mrb[0].mxu0
  %486 = vdwg.mxu0
  %v487 = vadd.f32 %v416, %v484
  %v488 = vtanh.pop %v487
  %v489 = vld [vmem:[#allocation3 + $0x20] sm:$0xff]
  %490 = vmatprep.subr.mxu0 0.0
  %491 = vmatpush1.msra.mxu0 %v182
  %492 = vmatprep.subr.mxu0 0.0
  %493 = vmatpush1.msra.mxu0 %v183
  %494 = vmatprep.subr.mxu0 0.0
  %495 = vmatpush1.msra.mxu0 %v184
  %496 = vmatprep.subr.mxu0 0.0
  %497 = vmatpush1.msra.mxu0 %v185
  %498 = vmatprep.subr.mxu0 0.0
  %499 = vmatpush1.msra.mxu0 %v186
  %500 = vmatprep.subr.mxu0 0.0
  %501 = vmatpush1.msra.mxu0 %v187
  %502 = vmatprep.subr.mxu0 0.0
  %503 = vmatpush1.msra.mxu0 %v188
  %504 = vmatprep.subr.mxu0 0.0
  %505 = vmatpush1.msra.mxu0 %v189
  %506 = vmatprep.subr.mxu0 0.0
  %507 = vmatpush1.msra.mxu0 %v190
  %508 = vmatprep.subr.mxu0 0.0
  %509 = vmatpush1.msra.mxu0 %v191
  %510 = vmatprep.subr.mxu0 0.0
  %511 = vmatpush1.msra.mxu0 %v192
  %512 = vmatprep.subr.mxu0 0.0
  %513 = vmatpush1.msra.mxu0 %v193
  %514 = vmatprep.subr.mxu0 0.0
  %515 = vmatpush1.msra.mxu0 %v194
  %516 = vmatprep.subr.mxu0 0.0
  %517 = vmatpush1.msra.mxu0 %v195
  %518 = vmatprep.subr.mxu0 0.0
  %519 = vmatpush1.msra.mxu0 %v196
  %520 = vmatprep.subr.mxu0 0.0
  %521 = vmatpush1.msra.mxu0 %v197
  %522 = vmatprep.subr.mxu0 0.0
  %523 = vmatpush1.msra.mxu0 0.0
  %524 = vmatprep.subr.mxu0 0.0
  %525 = vmatpush1.msra.mxu0 0.0
  %526 = vmatprep.subr.mxu0 0.0
  %527 = vmatpush1.msra.mxu0 0.0
  %528 = vmatprep.subr.mxu0 0.0
  %529 = vmatpush1.msra.mxu0 0.0
  %530 = vmatprep.subr.mxu0 0.0
  %531 = vmatpush1.msra.mxu0 0.0
  %532 = vmatprep.subr.mxu0 0.0
  %533 = vmatpush1.msra.mxu0 0.0
  %534 = vmatprep.subr.mxu0 0.0
  %535 = vmatpush1.msra.mxu0 0.0
  %536 = vmatprep.subr.mxu0 0.0
  %537 = vmatpush1.msra.mxu0 0.0
  %538 = vmatprep.subr.mxu0 0.0
  %539 = vmatpush1.msra.mxu0 0.0
  %540 = vmatprep.subr.mxu0 0.0
  %541 = vmatpush1.msra.mxu0 0.0
  %542 = vmatprep.subr.mxu0 0.0
  %543 = vmatpush1.msra.mxu0 0.0
  %544 = vmatprep.subr.mxu0 0.0
  %545 = vmatpush1.msra.mxu0 0.0
  %546 = vmatprep.subr.mxu0 0.0
  %547 = vmatpush1.msra.mxu0 0.0
  %548 = vmatprep.subr.mxu0 0.0
  %549 = vmatpush1.msra.mxu0 0.0
  %550 = vmatprep.subr.mxu0 0.0
  %551 = vmatpush1.msra.mxu0 0.0
  %552 = vmatprep.subr.mxu0 0.0
  %553 = vmatpush1.msra.mxu0 0.0
  %554 = vmatprep.mubr.f32.mxu0 0.0
  %555 = vmatmul.mubr.f32.gmra.mrb[0].mxu0 %v488
  %v556 = vpop.f32.mrb[0].mxu0
  %v557 = vadd.f32 0.0, %v556
  %v558 = vpop.f32.mrb[0].mxu0
  %559 = vdwg.mxu0
  %v560 = vadd.f32 %v489, %v557
  %v561 = vtanh.pop %v560
  %v562 = vld [vmem:[#allocation3 + $0x28] sm:$0xff]
  %563 = vmatprep.subr.mxu0 0.0
  %564 = vmatpush1.msra.mxu0 %v182
  %565 = vmatprep.subr.mxu0 0.0
  %566 = vmatpush1.msra.mxu0 %v183
  %567 = vmatprep.subr.mxu0 0.0
  %568 = vmatpush1.msra.mxu0 %v184
  %569 = vmatprep.subr.mxu0 0.0
  %570 = vmatpush1.msra.mxu0 %v185
  %571 = vmatprep.subr.mxu0 0.0
  %572 = vmatpush1.msra.mxu0 %v186
  %573 = vmatprep.subr.mxu0 0.0
  %574 = vmatpush1.msra.mxu0 %v187
  %575 = vmatprep.subr.mxu0 0.0
  %576 = vmatpush1.msra.mxu0 %v188
  %577 = vmatprep.subr.mxu0 0.0
  %578 = vmatpush1.msra.mxu0 %v189
  %579 = vmatprep.subr.mxu0 0.0
  %580 = vmatpush1.msra.mxu0 %v190
  %581 = vmatprep.subr.mxu0 0.0
  %582 = vmatpush1.msra.mxu0 %v191
  %583 = vmatprep.subr.mxu0 0.0
  %584 = vmatpush1.msra.mxu0 %v192
  %585 = vmatprep.subr.mxu0 0.0
  %586 = vmatpush1.msra.mxu0 %v193
  %587 = vmatprep.subr.mxu0 0.0
  %588 = vmatpush1.msra.mxu0 %v194
  %589 = vmatprep.subr.mxu0 0.0
  %590 = vmatpush1.msra.mxu0 %v195
  %591 = vmatprep.subr.mxu0 0.0
  %592 = vmatpush1.msra.mxu0 %v196
  %593 = vmatprep.subr.mxu0 0.0
  %594 = vmatpush1.msra.mxu0 %v197
  %595 = vmatprep.subr.mxu0 0.0
  %596 = vmatpush1.msra.mxu0 0.0
  %597 = vmatprep.subr.mxu0 0.0
  %598 = vmatpush1.msra.mxu0 0.0
  %599 = vmatprep.subr.mxu0 0.0
  %600 = vmatpush1.msra.mxu0 0.0
  %601 = vmatprep.subr.mxu0 0.0
  %602 = vmatpush1.msra.mxu0 0.0
  %603 = vmatprep.subr.mxu0 0.0
  %604 = vmatpush1.msra.mxu0 0.0
  %605 = vmatprep.subr.mxu0 0.0
  %606 = vmatpush1.msra.mxu0 0.0
  %607 = vmatprep.subr.mxu0 0.0
  %608 = vmatpush1.msra.mxu0 0.0
  %609 = vmatprep.subr.mxu0 0.0
  %610 = vmatpush1.msra.mxu0 0.0
  %611 = vmatprep.subr.mxu0 0.0
  %612 = vmatpush1.msra.mxu0 0.0
  %613 = vmatprep.subr.mxu0 0.0
  %614 = vmatpush1.msra.mxu0 0.0
  %615 = vmatprep.subr.mxu0 0.0
  %616 = vmatpush1.msra.mxu0 0.0
  %617 = vmatprep.subr.mxu0 0.0
  %618 = vmatpush1.msra.mxu0 0.0
  %619 = vmatprep.subr.mxu0 0.0
  %620 = vmatpush1.msra.mxu0 0.0
  %621 = vmatprep.subr.mxu0 0.0
  %622 = vmatpush1.msra.mxu0 0.0
  %623 = vmatprep.subr.mxu0 0.0
  %624 = vmatpush1.msra.mxu0 0.0
  %625 = vmatprep.subr.mxu0 0.0
  %626 = vmatpush1.msra.mxu0 0.0
  %627 = vmatprep.mubr.f32.mxu0 0.0
  %628 = vmatmul.mubr.f32.gmra.mrb[0].mxu0 %v561
  %v629 = vpop.f32.mrb[0].mxu0
  %v630 = vadd.f32 0.0, %v629
  %v631 = vpop.f32.mrb[0].mxu0
  %632 = vdwg.mxu0
  %v633 = vadd.f32 %v562, %v630
  %v634 = vtanh.pop %v633
  %v635 = vld [vmem:[#allocation3 + $0x30] sm:$0xff]
  %636 = vmatprep.subr.mxu0 0.0
  %637 = vmatpush1.msra.mxu0 %v182
  %638 = vmatprep.subr.mxu0 0.0
  %639 = vmatpush1.msra.mxu0 %v183
  %640 = vmatprep.subr.mxu0 0.0
  %641 = vmatpush1.msra.mxu0 %v184
  %642 = vmatprep.subr.mxu0 0.0
  %643 = vmatpush1.msra.mxu0 %v185
  %644 = vmatprep.subr.mxu0 0.0
  %645 = vmatpush1.msra.mxu0 %v186
  %646 = vmatprep.subr.mxu0 0.0
  %647 = vmatpush1.msra.mxu0 %v187
  %648 = vmatprep.subr.mxu0 0.0
  %649 = vmatpush1.msra.mxu0 %v188
  %650 = vmatprep.subr.mxu0 0.0
  %651 = vmatpush1.msra.mxu0 %v189
  %652 = vmatprep.subr.mxu0 0.0
  %653 = vmatpush1.msra.mxu0 %v190
  %654 = vmatprep.subr.mxu0 0.0
  %655 = vmatpush1.msra.mxu0 %v191
  %656 = vmatprep.subr.mxu0 0.0
  %657 = vmatpush1.msra.mxu0 %v192
  %658 = vmatprep.subr.mxu0 0.0
  %659 = vmatpush1.msra.mxu0 %v193
  %660 = vmatprep.subr.mxu0 0.0
  %661 = vmatpush1.msra.mxu0 %v194
  %662 = vmatprep.subr.mxu0 0.0
  %663 = vmatpush1.msra.mxu0 %v195
  %664 = vmatprep.subr.mxu0 0.0
  %665 = vmatpush1.msra.mxu0 %v196
  %666 = vmatprep.subr.mxu0 0.0
  %667 = vmatpush1.msra.mxu0 %v197
  %668 = vmatprep.subr.mxu0 0.0
  %669 = vmatpush1.msra.mxu0 0.0
  %670 = vmatprep.subr.mxu0 0.0
  %671 = vmatpush1.msra.mxu0 0.0
  %672 = vmatprep.subr.mxu0 0.0
  %673 = vmatpush1.msra.mxu0 0.0
  %674 = vmatprep.subr.mxu0 0.0
  %675 = vmatpush1.msra.mxu0 0.0
  %676 = vmatprep.subr.mxu0 0.0
  %677 = vmatpush1.msra.mxu0 0.0
  %678 = vmatprep.subr.mxu0 0.0
  %679 = vmatpush1.msra.mxu0 0.0
  %680 = vmatprep.subr.mxu0 0.0
  %681 = vmatpush1.msra.mxu0 0.0
  %682 = vmatprep.subr.mxu0 0.0
  %683 = vmatpush1.msra.mxu0 0.0
  %684 = vmatprep.subr.mxu0 0.0
  %685 = vmatpush1.msra.mxu0 0.0
  %686 = vmatprep.subr.mxu0 0.0
  %687 = vmatpush1.msra.mxu0 0.0
  %688 = vmatprep.subr.mxu0 0.0
  %689 = vmatpush1.msra.mxu0 0.0
  %690 = vmatprep.subr.mxu0 0.0
  %691 = vmatpush1.msra.mxu0 0.0
  %692 = vmatprep.subr.mxu0 0.0
  %693 = vmatpush1.msra.mxu0 0.0
  %694 = vmatprep.subr.mxu0 0.0
  %695 = vmatpush1.msra.mxu0 0.0
  %696 = vmatprep.subr.mxu0 0.0
  %697 = vmatpush1.msra.mxu0 0.0
  %698 = vmatprep.subr.mxu0 0.0
  %699 = vmatpush1.msra.mxu0 0.0
  %700 = vmatprep.mubr.f32.mxu0 0.0
  %701 = vmatmul.mubr.f32.gmra.mrb[0].mxu0 %v634
  %v702 = vpop.f32.mrb[0].mxu0
  %v703 = vadd.f32 0.0, %v702
  %v704 = vpop.f32.mrb[0].mxu0
  %705 = vdwg.mxu0
  %v706 = vadd.f32 %v635, %v703
  %v707 = vtanh.pop %v706
  %v708 = vld [vmem:[#allocation3 + $0x38] sm:$0xff]
  %709 = vmatprep.subr.mxu0 0.0
  %710 = vmatpush1.msra.mxu0 %v182
  %711 = vmatprep.subr.mxu0 0.0
  %712 = vmatpush1.msra.mxu0 %v183
  %713 = vmatprep.subr.mxu0 0.0
  %714 = vmatpush1.msra.mxu0 %v184
  %715 = vmatprep.subr.mxu0 0.0
  %716 = vmatpush1.msra.mxu0 %v185
  %717 = vmatprep.subr.mxu0 0.0
  %718 = vmatpush1.msra.mxu0 %v186
  %719 = vmatprep.subr.mxu0 0.0
  %720 = vmatpush1.msra.mxu0 %v187
  %721 = vmatprep.subr.mxu0 0.0
  %722 = vmatpush1.msra.mxu0 %v188
  %723 = vmatprep.subr.mxu0 0.0
  %724 = vmatpush1.msra.mxu0 %v189
  %725 = vmatprep.subr.mxu0 0.0
  %726 = vmatpush1.msra.mxu0 %v190
  %727 = vmatprep.subr.mxu0 0.0
  %728 = vmatpush1.msra.mxu0 %v191
  %729 = vmatprep.subr.mxu0 0.0
  %730 = vmatpush1.msra.mxu0 %v192
  %731 = vmatprep.subr.mxu0 0.0
  %732 = vmatpush1.msra.mxu0 %v193
  %733 = vmatprep.subr.mxu0 0.0
  %734 = vmatpush1.msra.mxu0 %v194
  %735 = vmatprep.subr.mxu0 0.0
  %736 = vmatpush1.msra.mxu0 %v195
  %737 = vmatprep.subr.mxu0 0.0
  %738 = vmatpush1.msra.mxu0 %v196
  %739 = vmatprep.subr.mxu0 0.0
  %740 = vmatpush1.msra.mxu0 %v197
  %741 = vmatprep.subr.mxu0 0.0
  %742 = vmatpush1.msra.mxu0 0.0
  %743 = vmatprep.subr.mxu0 0.0
  %744 = vmatpush1.msra.mxu0 0.0
  %745 = vmatprep.subr.mxu0 0.0
  %746 = vmatpush1.msra.mxu0 0.0
  %747 = vmatprep.subr.mxu0 0.0
  %748 = vmatpush1.msra.mxu0 0.0
  %749 = vmatprep.subr.mxu0 0.0
  %750 = vmatpush1.msra.mxu0 0.0
  %751 = vmatprep.subr.mxu0 0.0
  %752 = vmatpush1.msra.mxu0 0.0
  %753 = vmatprep.subr.mxu0 0.0
  %754 = vmatpush1.msra.mxu0 0.0
  %755 = vmatprep.subr.mxu0 0.0
  %756 = vmatpush1.msra.mxu0 0.0
  %757 = vmatprep.subr.mxu0 0.0
  %758 = vmatpush1.msra.mxu0 0.0
  %759 = vmatprep.subr.mxu0 0.0
  %760 = vmatpush1.msra.mxu0 0.0
  %761 = vmatprep.subr.mxu0 0.0
  %762 = vmatpush1.msra.mxu0 0.0
  %763 = vmatprep.subr.mxu0 0.0
  %764 = vmatpush1.msra.mxu0 0.0
  %765 = vmatprep.subr.mxu0 0.0
  %766 = vmatpush1.msra.mxu0 0.0
  %767 = vmatprep.subr.mxu0 0.0
  %768 = vmatpush1.msra.mxu0 0.0
  %769 = vmatprep.subr.mxu0 0.0
  %770 = vmatpush1.msra.mxu0 0.0
  %771 = vmatprep.subr.mxu0 0.0
  %772 = vmatpush1.msra.mxu0 0.0
  %773 = vmatprep.mubr.f32.mxu0 0.0
  %774 = vmatmul.mubr.f32.gmra.mrb[0].mxu0 %v707
  %v775 = vpop.f32.mrb[0].mxu0
  %v776 = vadd.f32 0.0, %v775
  %v777 = vpop.f32.mrb[0].mxu0
  %778 = vdwg.mxu0
  %v779 = vadd.f32 %v708, %v776
  %v780 = vtanh.pop %v779
  %781 = vst [vmem:[#allocation2] sm:$0xff] %v780
  // Predicated region
  $region30: #{rnn_model_forward.3} parent=0 // pred_check
    %p782 = pneg %p23
  $region31: #{rnn_model_forward.3} parent=0 // pred_check_branch
    %784 = sbr.rel (%p782) target = $region33
  $region32: #{rnn_model_forward.3} parent=0 // pred_region
    %v785 = vld [vmem:[%s4] sm:$0xff]
    %v786 = vld [vmem:[%s4 + $0x8] sm:$0xff]
    %v787 = vld [vmem:[%s4 + $0x10] sm:$0xff]
    %v788 = vld [vmem:[%s4 + $0x18] sm:$0xff]
    %v789 = vld [vmem:[%s4 + $0x20] sm:$0xff]
    %v790 = vld [vmem:[%s4 + $0x28] sm:$0xff]
    %v791 = vld [vmem:[%s4 + $0x30] sm:$0xff]
    %v792 = vld [vmem:[%s4 + $0x38] sm:$0xff]
    %v793 = vld [vmem:[%s4 + $0x40] sm:$0xff]
    %v794 = vld [vmem:[%s4 + $0x48] sm:$0xff]
    %v795 = vld [vmem:[%s4 + $0x50] sm:$0xff]
    %v796 = vld [vmem:[%s4 + $0x58] sm:$0xff]
    %v797 = vld [vmem:[%s4 + $0x60] sm:$0xff]
    %v798 = vld [vmem:[%s4 + $0x68] sm:$0xff]
    %v799 = vld [vmem:[%s4 + $0x70] sm:$0xff]
    %v800 = vld [vmem:[%s4 + $0x78] sm:$0xff]
    %v801 = vld [vmem:[%s5] sm:$0x1]
    %v803 = vlaneseq
    %v804 = vshrl.u32 %v803, 7
    %v805 = vsub.s32 0, %v804
    %v806 = vrot.slane %v801, %v805
    %808 = vmatprep.subr.mxu0 0.0
    %809 = vmatpush1.msra.mxu0 %v785
    %810 = vmatprep.subr.mxu0 0.0
    %811 = vmatpush1.msra.mxu0 %v786
    %812 = vmatprep.subr.mxu0 0.0
    %813 = vmatpush1.msra.mxu0 %v787
    %814 = vmatprep.subr.mxu0 0.0
    %815 = vmatpush1.msra.mxu0 %v788
    %816 = vmatprep.subr.mxu0 0.0
    %817 = vmatpush1.msra.mxu0 %v789
    %818 = vmatprep.subr.mxu0 0.0
    %819 = vmatpush1.msra.mxu0 %v790
    %820 = vmatprep.subr.mxu0 0.0
    %821 = vmatpush1.msra.mxu0 %v791
    %822 = vmatprep.subr.mxu0 0.0
    %823 = vmatpush1.msra.mxu0 %v792
    %824 = vmatprep.subr.mxu0 0.0
    %825 = vmatpush1.msra.mxu0 %v793
    %826 = vmatprep.subr.mxu0 0.0
    %827 = vmatpush1.msra.mxu0 %v794
    %828 = vmatprep.subr.mxu0 0.0
    %829 = vmatpush1.msra.mxu0 %v795
    %830 = vmatprep.subr.mxu0 0.0
    %831 = vmatpush1.msra.mxu0 %v796
    %832 = vmatprep.subr.mxu0 0.0
    %833 = vmatpush1.msra.mxu0 %v797
    %834 = vmatprep.subr.mxu0 0.0
    %835 = vmatpush1.msra.mxu0 %v798
    %836 = vmatprep.subr.mxu0 0.0
    %837 = vmatpush1.msra.mxu0 %v799
    %838 = vmatprep.subr.mxu0 0.0
    %839 = vmatpush1.msra.mxu0 %v800
    %840 = vmatprep.subr.mxu0 0.0
    %841 = vmatpush1.msra.mxu0 0.0
    %842 = vmatprep.subr.mxu0 0.0
    %843 = vmatpush1.msra.mxu0 0.0
    %844 = vmatprep.subr.mxu0 0.0
    %845 = vmatpush1.msra.mxu0 0.0
    %846 = vmatprep.subr.mxu0 0.0
    %847 = vmatpush1.msra.mxu0 0.0
    %848 = vmatprep.subr.mxu0 0.0
    %849 = vmatpush1.msra.mxu0 0.0
    %850 = vmatprep.subr.mxu0 0.0
    %851 = vmatpush1.msra.mxu0 0.0
    %852 = vmatprep.subr.mxu0 0.0
    %853 = vmatpush1.msra.mxu0 0.0
    %854 = vmatprep.subr.mxu0 0.0
    %855 = vmatpush1.msra.mxu0 0.0
    %856 = vmatprep.subr.mxu0 0.0
    %857 = vmatpush1.msra.mxu0 0.0
    %858 = vmatprep.subr.mxu0 0.0
    %859 = vmatpush1.msra.mxu0 0.0
    %860 = vmatprep.subr.mxu0 0.0
    %861 = vmatpush1.msra.mxu0 0.0
    %862 = vmatprep.subr.mxu0 0.0
    %863 = vmatpush1.msra.mxu0 0.0
    %864 = vmatprep.subr.mxu0 0.0
    %865 = vmatpush1.msra.mxu0 0.0
    %866 = vmatprep.subr.mxu0 0.0
    %867 = vmatpush1.msra.mxu0 0.0
    %868 = vmatprep.subr.mxu0 0.0
    %869 = vmatpush1.msra.mxu0 0.0
    %870 = vmatprep.subr.mxu0 0.0
    %871 = vmatpush1.msra.mxu0 0.0
    %872 = vmatprep.mubr.f32.mxu0 0.0
    %873 = vmatmul.mubr.f32.gmra.mrb[0].mxu0 %v780
    %v874 = vpop.f32.mrb[0].mxu0
    %v875 = vadd.f32 %v806, %v874
    %v876 = vpop.f32.mrb[0].mxu0
    %877 = vdwg.mxu0
    %878 = vst [vmem:[%s6] sm:$0xff] %v875
  $region33: #{rnn_model_forward.3} parent=0 // pred_fallthru
    _
  // Predicated region
  $region34: #{rnn_model_forward.3} parent=0 // pred_check
    _
  $region35: #{rnn_model_forward.3} parent=0 // pred_check_branch
    %880 = sbr.rel (0) target = $region37
  $region36: #{rnn_model_forward.3} parent=0 // pred_region
    _
  $region37: #{rnn_model_forward.3} parent=0 // pred_fallthru
    _
  // Predicated region
  $region38: #{rnn_model_forward.3} parent=0 // pred_check
    _
  $region39: #{rnn_model_forward.3} parent=0 // pred_check_branch
    %882 = sbr.rel (0) target = $region41
  $region40: #{rnn_model_forward.3} parent=0 // pred_region
    _
  $region41: #{rnn_model_forward.3} parent=0 // pred_fallthru
    _

</llo_original>
